<compile_context>
chip_gen: v5e
topology: v5e:2x2
jax: 0.10.0
libtpu: 0.0.40
codegen_flags: <defaults>
</compile_context>

<pallas_src>
import functools

import jax
import jax.numpy as jnp
from jax.experimental import pallas as pl
from jax.experimental.pallas import tpu as pltpu


T_WIDTHS = (16, 32, 64)   # teacher per-stage channels
S_WIDTHS = (8, 16, 32)    # student per-stage channels (connector maps s -> t channels)
NUM_CLASSES = 10


# ----------------------------------------------------------------------------
# Fused Pallas kernel (one batch sample per grid step)
# ----------------------------------------------------------------------------
def _distiller_fused_kernel(*refs, n_stages):
    """Fused teacher + student + connector + MSE + head kernel.

    refs layout (S = n_stages):
      [0]              x          (1, HW, Cin)        bf16
      [1 : 1+2S]       teacher    w_i (C_{i-1}, Ct_i) bf16, b_i (1, Ct_i) f32
      [1+2S : 1+4S]    student    w_i, b_i            (same pattern, Cs_i channels)
      [1+4S : 1+5S]    connectors wc_i (Cs_i, Ct_i)   bf16  (eval-mode BN folded)
      [1+5S]           wh         (Cs_last, n_cls)    bf16  (1/HW mean-pool folded)
      [2+5S]           bh         (1, n_cls)          f32
      [3+5S]           out_ref    (1, 1, n_cls)       f32
      [4+5S]           loss_ref   (1, 1, 1)           f32
    """
    S = n_stages
    x_ref = refs[0]
    t_refs = refs[1:1 + 2 * S]
    s_refs = refs[1 + 2 * S:1 + 4 * S]
    c_refs = refs[1 + 4 * S:1 + 5 * S]
    wh_ref = refs[1 + 5 * S]
    bh_ref = refs[2 + 5 * S]
    out_ref = refs[3 + 5 * S]
    loss_ref = refs[4 + 5 * S]

    x = x_ref[0]                                  # (HW, Cin) bf16
    h_t = x
    h_s = x
    h_s_f32 = None
    loss = jnp.zeros((), jnp.float32)

    for i in range(S):
        wt = t_refs[2 * i][...]
        bt = t_refs[2 * i + 1][...]
        ws = s_refs[2 * i][...]
        bs = s_refs[2 * i + 1][...]
        wc = c_refs[i][...]

        # Teacher stage; pre-ReLU feature is the (detach()ed) distillation target.
        # detach only matters for backward; forward value is identical.
        t_pre = jnp.dot(h_t, wt, preferred_element_type=jnp.float32) + bt
        h_t = jnp.maximum(t_pre, 0.0).astype(x.dtype)

        # Student stage (pre-ReLU feature feeds the connector).
        s_pre = jnp.dot(h_s, ws, preferred_element_type=jnp.float32) + bs
        h_s_f32 = jnp.maximum(s_pre, 0.0)
        h_s = h_s_f32.astype(x.dtype)

        # Connector: 1x1 conv (bias=False) with eval-mode BatchNorm folded into wc.
        s_conn = jnp.dot(s_pre.astype(x.dtype), wc,
                         preferred_element_type=jnp.float32)

        # sum-MSE with the 1 / 2**(S-1-i) stage weight folded into the accumulation.
        # TODO(synk): the spec's call site passes a margin buffer to
        # distillation_loss, but the provided distillation_loss(source, target)
        # ignores it, so plain sum-MSE is implemented here.
        d = s_conn - t_pre
        loss = loss + jnp.sum(d * d) * (1.0 / (2.0 ** (S - i - 1)))

    # Student classification head (teacher head is skipped: its output is unused).
    # 1/(H*W) mean-pool factor is folded into wh, so a plain sum-pool suffices.
    pooled = jnp.sum(h_s_f32, axis=0, keepdims=True)            # (1, Cs_last) f32
    logits = jnp.dot(pooled.astype(x.dtype), wh_ref[...],
                     preferred_element_type=jnp.float32) + bh_ref[...]
    out_ref[...] = logits.reshape(1, 1, -1).astype(out_ref.dtype)
    loss_ref[...] = loss.reshape(1, 1, 1)


# ----------------------------------------------------------------------------
# Wrapper
# ----------------------------------------------------------------------------
def _full_block_spec(arr):
    nd = arr.ndim
    return pl.BlockSpec(arr.shape, lambda n, _nd=nd: (0,) * _nd)


def distiller_forward(t_params, s_params, c_params, x_nchw):
    """Distiller.forward: returns (s_out, loss_distill)."""
    N, Cin, H, W = x_nchw.shape
    HW = H * W
    S = len(c_params)
    num_classes = s_params["wh"].shape[1]

    # NCHW (PyTorch) -> (N, HW, Cin); one tiny layout op, everything else is fused.
    x = jnp.transpose(x_nchw, (0, 2, 3, 1)).reshape(N, HW, Cin).astype(jnp.bfloat16)

    weights = []
    for params in (t_params, s_params):
        for i in range(S):
            weights.append(params[f"w{i}"].astype(jnp.bfloat16))   # MXU input: bf16
            weights.append(params[f"b{i}"])                        # bias stays f32
    for i in range(S):
        weights.append(c_params[f"wc{i}"].astype(jnp.bfloat16))
    weights.append((s_params["wh"] / jnp.float32(HW)).astype(jnp.bfloat16))  # pool folded
    weights.append(s_params["bh"])

    in_specs = [pl.BlockSpec((1, HW, Cin), lambda n: (n, 0, 0))]
    in_specs += [_full_block_spec(w) for w in weights]

    out_shape = (jax.ShapeDtypeStruct((N, 1, num_classes), jnp.float32),
                 jax.ShapeDtypeStruct((N, 1, 1), jnp.float32))
    out_specs = (pl.BlockSpec((1, 1, num_classes), lambda n: (n, 0, 0)),
                 pl.BlockSpec((1, 1, 1), lambda n: (n, 0, 0)))

    s_out3, loss_parts = pl.pallas_call(
        functools.partial(_distiller_fused_kernel, n_stages=S),
        out_shape=out_shape,
        grid=(N,),
        in_specs=in_specs,
        out_specs=out_specs,
        compiler_params=pltpu.CompilerParams(
            dimension_semantics=("parallel",),        # shard batch over v7x's 2 TCs
            vmem_limit_bytes=32 * 1024 * 1024),
    )(x, *weights)

    return s_out3.reshape(N, num_classes), jnp.sum(loss_parts)


# ----------------------------------------------------------------------------
# Synthetic teacher / student nets + connectors (deterministic init), matching
# the extract_feature(x, preReLU=True) -> (feats, out) contract of Distiller.
# ----------------------------------------------------------------------------
def init_net(key, cin, widths, num_classes=NUM_CLASSES):
    params = {}
    k = key
    c_prev = cin
    for i, c in enumerate(widths):
        k, k1, k2 = jax.random.split(k, 3)
        params[f"w{i}"] = (jax.random.normal(k1, (c_prev, c), jnp.float32)
                           / jnp.sqrt(jnp.float32(c_prev)))
        params[f"b{i}"] = 0.01 * jax.random.normal(k2, (1, c), jnp.float32)
        c_prev = c
    k, k1, k2 = jax.random.split(k, 3)
    params["wh"] = (jax.random.normal(k1, (c_prev, num_classes), jnp.float32)
                    / jnp.sqrt(jnp.float32(c_prev)))
    params["bh"] = 0.01 * jax.random.normal(k2, (1, num_classes), jnp.float32)
    return params


def init_connectors(key, t_channels, s_channels):
    """build_feature_connector: 1x1 conv (bias=False, weight ~ N(0, sqrt(2/t_ch)))
    followed by BatchNorm2d(weight=1, bias=0).  Eval-mode BN with default running
    stats (mean=0, var=1) is the affine x / sqrt(1 + eps); folded into the weight.
    """
    # TODO(synk): train-mode BatchNorm (per-batch statistics) is not implemented;
    # only the eval-mode affine is folded into the connector weight.
    params = {}
    bn_scale = 1.0 / jnp.sqrt(jnp.float32(1.0 + 1e-5))
    k = key
    for i, (tc, sc) in enumerate(zip(t_channels, s_channels)):
        k, k1 = jax.random.split(k)
        w = jax.random.normal(k1, (sc, tc), jnp.float32) * jnp.sqrt(jnp.float32(2.0 / tc))
        params[f"wc{i}"] = w * bn_scale
    return params


if __name__ == "__main__":
    key = jax.random.PRNGKey(0)
    kx, kt, ks, kc = jax.random.split(key, 4)

    x = jax.random.normal(kx, (2, 4, 16, 16), jnp.float32)    # NCHW, like PyTorch
    t_params = init_net(kt, cin=4, widths=T_WIDTHS)
    s_params = init_net(ks, cin=4, widths=S_WIDTHS)
    c_params = init_connectors(kc, T_WIDTHS, S_WIDTHS)

    fwd = jax.jit(distiller_forward)
    s_out, loss = fwd(t_params, s_params, c_params, x)
    jax.block_until_ready((s_out, loss))

    assert s_out.shape == (2, NUM_CLASSES)
    assert loss.shape == ()
    assert bool(jnp.isfinite(loss))
    print("KERNEL_OK")
</pallas_src>

<mosaic_0001>
module attributes {stable_mosaic.version = 11 : i64} {
  func.func @_distiller_fused_kernel(%arg0: i32, %arg1: memref<1x256x4xbf16, #tpu.memory_space<vmem>>, %arg2: memref<4x16xbf16, #tpu.memory_space<vmem>>, %arg3: memref<1x16xf32, #tpu.memory_space<vmem>>, %arg4: memref<16x32xbf16, #tpu.memory_space<vmem>>, %arg5: memref<1x32xf32, #tpu.memory_space<vmem>>, %arg6: memref<32x64xbf16, #tpu.memory_space<vmem>>, %arg7: memref<1x64xf32, #tpu.memory_space<vmem>>, %arg8: memref<4x8xbf16, #tpu.memory_space<vmem>>, %arg9: memref<1x8xf32, #tpu.memory_space<vmem>>, %arg10: memref<8x16xbf16, #tpu.memory_space<vmem>>, %arg11: memref<1x16xf32, #tpu.memory_space<vmem>>, %arg12: memref<16x32xbf16, #tpu.memory_space<vmem>>, %arg13: memref<1x32xf32, #tpu.memory_space<vmem>>, %arg14: memref<8x16xbf16, #tpu.memory_space<vmem>>, %arg15: memref<16x32xbf16, #tpu.memory_space<vmem>>, %arg16: memref<32x64xbf16, #tpu.memory_space<vmem>>, %arg17: memref<32x10xbf16, #tpu.memory_space<vmem>>, %arg18: memref<1x10xf32, #tpu.memory_space<vmem>>, %arg19: memref<1x1x10xf32, #tpu.memory_space<vmem>>, %arg20: memref<1x1x1xf32, #tpu.memory_space<vmem>>) attributes {dimension_semantics = [#tpu.dimension_semantics<parallel>], iteration_bounds = array<i64: 2>, scalar_prefetch = 0 : i64, scratch_operands = 0 : i64, tpu.core_type = #tpu.core_type<tc>, window_params = [{transform_indices = @transform_0, window_bounds = array<i64: 1, 256, 4>}, {pipeline_mode = #tpu.pipeline_mode<synchronous>, transform_indices = @transform_1, window_bounds = array<i64: 4, 16>}, {pipeline_mode = #tpu.pipeline_mode<synchronous>, transform_indices = @transform_2, window_bounds = array<i64: 1, 16>}, {pipeline_mode = #tpu.pipeline_mode<synchronous>, transform_indices = @transform_3, window_bounds = array<i64: 16, 32>}, {pipeline_mode = #tpu.pipeline_mode<synchronous>, transform_indices = @transform_4, window_bounds = array<i64: 1, 32>}, {pipeline_mode = #tpu.pipeline_mode<synchronous>, transform_indices = @transform_5, window_bounds = array<i64: 32, 64>}, {pipeline_mode = #tpu.pipeline_mode<synchronous>, transform_indices = @transform_6, window_bounds = array<i64: 1, 64>}, {pipeline_mode = #tpu.pipeline_mode<synchronous>, transform_indices = @transform_7, window_bounds = array<i64: 4, 8>}, {pipeline_mode = #tpu.pipeline_mode<synchronous>, transform_indices = @transform_8, window_bounds = array<i64: 1, 8>}, {pipeline_mode = #tpu.pipeline_mode<synchronous>, transform_indices = @transform_9, window_bounds = array<i64: 8, 16>}, {pipeline_mode = #tpu.pipeline_mode<synchronous>, transform_indices = @transform_10, window_bounds = array<i64: 1, 16>}, {pipeline_mode = #tpu.pipeline_mode<synchronous>, transform_indices = @transform_11, window_bounds = array<i64: 16, 32>}, {pipeline_mode = #tpu.pipeline_mode<synchronous>, transform_indices = @transform_12, window_bounds = array<i64: 1, 32>}, {pipeline_mode = #tpu.pipeline_mode<synchronous>, transform_indices = @transform_13, window_bounds = array<i64: 8, 16>}, {pipeline_mode = #tpu.pipeline_mode<synchronous>, transform_indices = @transform_14, window_bounds = array<i64: 16, 32>}, {pipeline_mode = #tpu.pipeline_mode<synchronous>, transform_indices = @transform_15, window_bounds = array<i64: 32, 64>}, {pipeline_mode = #tpu.pipeline_mode<synchronous>, transform_indices = @transform_16, window_bounds = array<i64: 32, 10>}, {pipeline_mode = #tpu.pipeline_mode<synchronous>, transform_indices = @transform_17, window_bounds = array<i64: 1, 10>}, {transform_indices = @transform_18, window_bounds = array<i64: 1, 1, 10>}, {transform_indices = @transform_19, window_bounds = array<i64: 1, 1, 1>}]} {
    %c0 = arith.constant 0 : index
    %c0_0 = arith.constant 0 : index
    %c0_1 = arith.constant 0 : index
    %0 = vector.load %arg1[%c0, %c0_0, %c0_1] : memref<1x256x4xbf16, #tpu.memory_space<vmem>>, vector<1x256x4xbf16>
    %1 = vector.shape_cast %0 : vector<1x256x4xbf16> to vector<256x4xbf16>
    %c0_2 = arith.constant 0 : index
    %c0_3 = arith.constant 0 : index
    %2 = vector.load %arg2[%c0_2, %c0_3] : memref<4x16xbf16, #tpu.memory_space<vmem>>, vector<4x16xbf16>
    %c0_4 = arith.constant 0 : index
    %c0_5 = arith.constant 0 : index
    %3 = vector.load %arg3[%c0_4, %c0_5] : memref<1x16xf32, #tpu.memory_space<vmem>>, vector<1x16xf32>
    %c0_6 = arith.constant 0 : index
    %c0_7 = arith.constant 0 : index
    %4 = vector.load %arg8[%c0_6, %c0_7] : memref<4x8xbf16, #tpu.memory_space<vmem>>, vector<4x8xbf16>
    %c0_8 = arith.constant 0 : index
    %c0_9 = arith.constant 0 : index
    %5 = vector.load %arg9[%c0_8, %c0_9] : memref<1x8xf32, #tpu.memory_space<vmem>>, vector<1x8xf32>
    %c0_10 = arith.constant 0 : index
    %c0_11 = arith.constant 0 : index
    %6 = vector.load %arg14[%c0_10, %c0_11] : memref<8x16xbf16, #tpu.memory_space<vmem>>, vector<8x16xbf16>
    %cst = arith.constant dense<0.000000e+00> : vector<256x16xf32>
    %7 = tpu.matmul %1, %2, %cst {dimension_numbers = #tpu.dot_dimension_numbers<[1], [0], [0], [1], [0, 0, 1, 1], [], []>} : vector<256x4xbf16>, vector<4x16xbf16>, vector<256x16xf32> -> vector<256x16xf32>
    %8 = vector.broadcast %3 : vector<1x16xf32> to vector<256x16xf32>
    %9 = arith.addf %7, %8 : vector<256x16xf32>
    %cst_12 = arith.constant 0.000000e+00 : f32
    %10 = vector.broadcast %cst_12 : f32 to vector<256x16xf32>
    %11 = arith.maximumf %9, %10 : vector<256x16xf32>
    %12 = arith.truncf %11 : vector<256x16xf32> to vector<256x16xbf16>
    %cst_13 = arith.constant dense<0.000000e+00> : vector<256x8xf32>
    %13 = tpu.matmul %1, %4, %cst_13 {dimension_numbers = #tpu.dot_dimension_numbers<[1], [0], [0], [1], [0, 0, 1, 1], [], []>} : vector<256x4xbf16>, vector<4x8xbf16>, vector<256x8xf32> -> vector<256x8xf32>
    %14 = vector.broadcast %5 : vector<1x8xf32> to vector<256x8xf32>
    %15 = arith.addf %13, %14 : vector<256x8xf32>
    %cst_14 = arith.constant 0.000000e+00 : f32
    %16 = vector.broadcast %cst_14 : f32 to vector<256x8xf32>
    %17 = arith.maximumf %15, %16 : vector<256x8xf32>
    %18 = arith.truncf %17 : vector<256x8xf32> to vector<256x8xbf16>
    %19 = arith.truncf %15 : vector<256x8xf32> to vector<256x8xbf16>
    %cst_15 = arith.constant dense<0.000000e+00> : vector<256x16xf32>
    %20 = tpu.matmul %19, %6, %cst_15 {dimension_numbers = #tpu.dot_dimension_numbers<[1], [0], [0], [1], [0, 0, 1, 1], [], []>} : vector<256x8xbf16>, vector<8x16xbf16>, vector<256x16xf32> -> vector<256x16xf32>
    %21 = arith.subf %20, %9 : vector<256x16xf32>
    %22 = arith.mulf %21, %21 : vector<256x16xf32>
    %23 = vector.shape_cast %22 : vector<256x16xf32> to vector<1x256x16xf32>
    %cst_16 = arith.constant dense<0.000000e+00> : vector<1xf32>
    %24 = vector.multi_reduction <add>, %23, %cst_16 [1, 2] : vector<1x256x16xf32> to vector<1xf32>
    %25 = vector.shape_cast %24 : vector<1xf32> to vector<1x1x1xf32>
    %26 = vector.extract %25[0, 0, 0] : f32 from vector<1x1x1xf32>
    %cst_17 = arith.constant 2.500000e-01 : f32
    %27 = arith.mulf %26, %cst_17 : f32
    %cst_18 = arith.constant 0.000000e+00 : f32
    %28 = arith.addf %cst_18, %27 : f32
    %c0_19 = arith.constant 0 : index
    %c0_20 = arith.constant 0 : index
    %29 = vector.load %arg4[%c0_19, %c0_20] : memref<16x32xbf16, #tpu.memory_space<vmem>>, vector<16x32xbf16>
    %c0_21 = arith.constant 0 : index
    %c0_22 = arith.constant 0 : index
    %30 = vector.load %arg5[%c0_21, %c0_22] : memref<1x32xf32, #tpu.memory_space<vmem>>, vector<1x32xf32>
    %c0_23 = arith.constant 0 : index
    %c0_24 = arith.constant 0 : index
    %31 = vector.load %arg10[%c0_23, %c0_24] : memref<8x16xbf16, #tpu.memory_space<vmem>>, vector<8x16xbf16>
    %c0_25 = arith.constant 0 : index
    %c0_26 = arith.constant 0 : index
    %32 = vector.load %arg11[%c0_25, %c0_26] : memref<1x16xf32, #tpu.memory_space<vmem>>, vector<1x16xf32>
    %c0_27 = arith.constant 0 : index
    %c0_28 = arith.constant 0 : index
    %33 = vector.load %arg15[%c0_27, %c0_28] : memref<16x32xbf16, #tpu.memory_space<vmem>>, vector<16x32xbf16>
    %cst_29 = arith.constant dense<0.000000e+00> : vector<256x32xf32>
    %34 = tpu.matmul %12, %29, %cst_29 {dimension_numbers = #tpu.dot_dimension_numbers<[1], [0], [0], [1], [0, 0, 1, 1], [], []>} : vector<256x16xbf16>, vector<16x32xbf16>, vector<256x32xf32> -> vector<256x32xf32>
    %35 = vector.broadcast %30 : vector<1x32xf32> to vector<256x32xf32>
    %36 = arith.addf %34, %35 : vector<256x32xf32>
    %cst_30 = arith.constant 0.000000e+00 : f32
    %37 = vector.broadcast %cst_30 : f32 to vector<256x32xf32>
    %38 = arith.maximumf %36, %37 : vector<256x32xf32>
    %39 = arith.truncf %38 : vector<256x32xf32> to vector<256x32xbf16>
    %cst_31 = arith.constant dense<0.000000e+00> : vector<256x16xf32>
    %40 = tpu.matmul %18, %31, %cst_31 {dimension_numbers = #tpu.dot_dimension_numbers<[1], [0], [0], [1], [0, 0, 1, 1], [], []>} : vector<256x8xbf16>, vector<8x16xbf16>, vector<256x16xf32> -> vector<256x16xf32>
    %41 = vector.broadcast %32 : vector<1x16xf32> to vector<256x16xf32>
    %42 = arith.addf %40, %41 : vector<256x16xf32>
    %cst_32 = arith.constant 0.000000e+00 : f32
    %43 = vector.broadcast %cst_32 : f32 to vector<256x16xf32>
    %44 = arith.maximumf %42, %43 : vector<256x16xf32>
    %45 = arith.truncf %44 : vector<256x16xf32> to vector<256x16xbf16>
    %46 = arith.truncf %42 : vector<256x16xf32> to vector<256x16xbf16>
    %cst_33 = arith.constant dense<0.000000e+00> : vector<256x32xf32>
    %47 = tpu.matmul %46, %33, %cst_33 {dimension_numbers = #tpu.dot_dimension_numbers<[1], [0], [0], [1], [0, 0, 1, 1], [], []>} : vector<256x16xbf16>, vector<16x32xbf16>, vector<256x32xf32> -> vector<256x32xf32>
    %48 = arith.subf %47, %36 : vector<256x32xf32>
    %49 = arith.mulf %48, %48 : vector<256x32xf32>
    %50 = vector.shape_cast %49 : vector<256x32xf32> to vector<1x256x32xf32>
    %cst_34 = arith.constant dense<0.000000e+00> : vector<1xf32>
    %51 = vector.multi_reduction <add>, %50, %cst_34 [1, 2] : vector<1x256x32xf32> to vector<1xf32>
    %52 = vector.shape_cast %51 : vector<1xf32> to vector<1x1x1xf32>
    %53 = vector.extract %52[0, 0, 0] : f32 from vector<1x1x1xf32>
    %cst_35 = arith.constant 5.000000e-01 : f32
    %54 = arith.mulf %53, %cst_35 : f32
    %55 = arith.addf %28, %54 : f32
    %c0_36 = arith.constant 0 : index
    %c0_37 = arith.constant 0 : index
    %56 = vector.load %arg6[%c0_36, %c0_37] : memref<32x64xbf16, #tpu.memory_space<vmem>>, vector<32x64xbf16>
    %c0_38 = arith.constant 0 : index
    %c0_39 = arith.constant 0 : index
    %57 = vector.load %arg7[%c0_38, %c0_39] : memref<1x64xf32, #tpu.memory_space<vmem>>, vector<1x64xf32>
    %c0_40 = arith.constant 0 : index
    %c0_41 = arith.constant 0 : index
    %58 = vector.load %arg12[%c0_40, %c0_41] : memref<16x32xbf16, #tpu.memory_space<vmem>>, vector<16x32xbf16>
    %c0_42 = arith.constant 0 : index
    %c0_43 = arith.constant 0 : index
    %59 = vector.load %arg13[%c0_42, %c0_43] : memref<1x32xf32, #tpu.memory_space<vmem>>, vector<1x32xf32>
    %c0_44 = arith.constant 0 : index
    %c0_45 = arith.constant 0 : index
    %60 = vector.load %arg16[%c0_44, %c0_45] : memref<32x64xbf16, #tpu.memory_space<vmem>>, vector<32x64xbf16>
    %cst_46 = arith.constant dense<0.000000e+00> : vector<256x64xf32>
    %61 = tpu.matmul %39, %56, %cst_46 {dimension_numbers = #tpu.dot_dimension_numbers<[1], [0], [0], [1], [0, 0, 1, 1], [], []>} : vector<256x32xbf16>, vector<32x64xbf16>, vector<256x64xf32> -> vector<256x64xf32>
    %62 = vector.broadcast %57 : vector<1x64xf32> to vector<256x64xf32>
    %63 = arith.addf %61, %62 : vector<256x64xf32>
    %cst_47 = arith.constant dense<0.000000e+00> : vector<256x32xf32>
    %64 = tpu.matmul %45, %58, %cst_47 {dimension_numbers = #tpu.dot_dimension_numbers<[1], [0], [0], [1], [0, 0, 1, 1], [], []>} : vector<256x16xbf16>, vector<16x32xbf16>, vector<256x32xf32> -> vector<256x32xf32>
    %65 = vector.broadcast %59 : vector<1x32xf32> to vector<256x32xf32>
    %66 = arith.addf %64, %65 : vector<256x32xf32>
    %cst_48 = arith.constant 0.000000e+00 : f32
    %67 = vector.broadcast %cst_48 : f32 to vector<256x32xf32>
    %68 = arith.maximumf %66, %67 : vector<256x32xf32>
    %69 = arith.truncf %66 : vector<256x32xf32> to vector<256x32xbf16>
    %cst_49 = arith.constant dense<0.000000e+00> : vector<256x64xf32>
    %70 = tpu.matmul %69, %60, %cst_49 {dimension_numbers = #tpu.dot_dimension_numbers<[1], [0], [0], [1], [0, 0, 1, 1], [], []>} : vector<256x32xbf16>, vector<32x64xbf16>, vector<256x64xf32> -> vector<256x64xf32>
    %71 = arith.subf %70, %63 : vector<256x64xf32>
    %72 = arith.mulf %71, %71 : vector<256x64xf32>
    %73 = vector.shape_cast %72 : vector<256x64xf32> to vector<1x256x64xf32>
    %cst_50 = arith.constant dense<0.000000e+00> : vector<1xf32>
    %74 = vector.multi_reduction <add>, %73, %cst_50 [1, 2] : vector<1x256x64xf32> to vector<1xf32>
    %75 = vector.shape_cast %74 : vector<1xf32> to vector<1x1x1xf32>
    %76 = vector.extract %75[0, 0, 0] : f32 from vector<1x1x1xf32>
    %cst_51 = arith.constant 1.000000e+00 : f32
    %77 = arith.mulf %76, %cst_51 : f32
    %78 = arith.addf %55, %77 : f32
    %cst_52 = arith.constant dense<0.000000e+00> : vector<32xf32>
    %79 = vector.multi_reduction <add>, %68, %cst_52 [0] : vector<256x32xf32> to vector<32xf32>
    %80 = vector.shape_cast %79 : vector<32xf32> to vector<1x32xf32>
    %81 = arith.truncf %80 : vector<1x32xf32> to vector<1x32xbf16>
    %c0_53 = arith.constant 0 : index
    %c0_54 = arith.constant 0 : index
    %82 = vector.load %arg17[%c0_53, %c0_54] : memref<32x10xbf16, #tpu.memory_space<vmem>>, vector<32x10xbf16>
    %cst_55 = arith.constant dense<0.000000e+00> : vector<1x10xf32>
    %83 = tpu.matmul %81, %82, %cst_55 {dimension_numbers = #tpu.dot_dimension_numbers<[1], [0], [0], [1], [0, 0, 1, 1], [], []>} : vector<1x32xbf16>, vector<32x10xbf16>, vector<1x10xf32> -> vector<1x10xf32>
    %c0_56 = arith.constant 0 : index
    %c0_57 = arith.constant 0 : index
    %84 = vector.load %arg18[%c0_56, %c0_57] : memref<1x10xf32, #tpu.memory_space<vmem>>, vector<1x10xf32>
    %85 = arith.addf %83, %84 : vector<1x10xf32>
    %86 = vector.shape_cast %85 : vector<1x10xf32> to vector<1x1x10xf32>
    %c0_58 = arith.constant 0 : index
    %c0_59 = arith.constant 0 : index
    %c0_60 = arith.constant 0 : index
    %87 = vector.load %arg19[%c0_58, %c0_59, %c0_60] : memref<1x1x10xf32, #tpu.memory_space<vmem>>, vector<1x1x10xf32>
    tpu.vector_store %arg19[%c0_58, %c0_59, %c0_60], %86 {strides = array<i32>} : memref<1x1x10xf32, #tpu.memory_space<vmem>>, vector<1x1x10xf32>,
    %88 = vector.broadcast %78 : f32 to vector<1x1x1xf32>
    %c0_61 = arith.constant 0 : index
    %c0_62 = arith.constant 0 : index
    %c0_63 = arith.constant 0 : index
    %89 = vector.load %arg20[%c0_61, %c0_62, %c0_63] : memref<1x1x1xf32, #tpu.memory_space<vmem>>, vector<1x1x1xf32>
    tpu.vector_store %arg20[%c0_61, %c0_62, %c0_63], %88 {strides = array<i32>} : memref<1x1x1xf32, #tpu.memory_space<vmem>>, vector<1x1x1xf32>,
    return
  }
  func.func @transform_0(%arg0: i32) -> (i32, i32, i32) {
    %c0_i32 = arith.constant 0 : i32
    %c0_i32_0 = arith.constant 0 : i32
    %c0_i32_1 = arith.constant 0 : i32
    return %arg0, %c0_i32, %c0_i32_0 : i32, i32, i32
  }
  func.func @transform_1(%arg0: i32) -> (i32, i32) {
    %c0_i32 = arith.constant 0 : i32
    %c0_i32_0 = arith.constant 0 : i32
    %c0_i32_1 = arith.constant 0 : i32
    return %c0_i32, %c0_i32_0 : i32, i32
  }
  func.func @transform_2(%arg0: i32) -> (i32, i32) {
    %c0_i32 = arith.constant 0 : i32
    %c0_i32_0 = arith.constant 0 : i32
    %c0_i32_1 = arith.constant 0 : i32
    return %c0_i32, %c0_i32_0 : i32, i32
  }
  func.func @transform_3(%arg0: i32) -> (i32, i32) {
    %c0_i32 = arith.constant 0 : i32
    %c0_i32_0 = arith.constant 0 : i32
    %c0_i32_1 = arith.constant 0 : i32
    return %c0_i32, %c0_i32_0 : i32, i32
  }
  func.func @transform_4(%arg0: i32) -> (i32, i32) {
    %c0_i32 = arith.constant 0 : i32
    %c0_i32_0 = arith.constant 0 : i32
    %c0_i32_1 = arith.constant 0 : i32
    return %c0_i32, %c0_i32_0 : i32, i32
  }
  func.func @transform_5(%arg0: i32) -> (i32, i32) {
    %c0_i32 = arith.constant 0 : i32
    %c0_i32_0 = arith.constant 0 : i32
    %c0_i32_1 = arith.constant 0 : i32
    return %c0_i32, %c0_i32_0 : i32, i32
  }
  func.func @transform_6(%arg0: i32) -> (i32, i32) {
    %c0_i32 = arith.constant 0 : i32
    %c0_i32_0 = arith.constant 0 : i32
    %c0_i32_1 = arith.constant 0 : i32
    return %c0_i32, %c0_i32_0 : i32, i32
  }
  func.func @transform_7(%arg0: i32) -> (i32, i32) {
    %c0_i32 = arith.constant 0 : i32
    %c0_i32_0 = arith.constant 0 : i32
    %c0_i32_1 = arith.constant 0 : i32
    return %c0_i32, %c0_i32_0 : i32, i32
  }
  func.func @transform_8(%arg0: i32) -> (i32, i32) {
    %c0_i32 = arith.constant 0 : i32
    %c0_i32_0 = arith.constant 0 : i32
    %c0_i32_1 = arith.constant 0 : i32
    return %c0_i32, %c0_i32_0 : i32, i32
  }
  func.func @transform_9(%arg0: i32) -> (i32, i32) {
    %c0_i32 = arith.constant 0 : i32
    %c0_i32_0 = arith.constant 0 : i32
    %c0_i32_1 = arith.constant 0 : i32
    return %c0_i32, %c0_i32_0 : i32, i32
  }
  func.func @transform_10(%arg0: i32) -> (i32, i32) {
    %c0_i32 = arith.constant 0 : i32
    %c0_i32_0 = arith.constant 0 : i32
    %c0_i32_1 = arith.constant 0 : i32
    return %c0_i32, %c0_i32_0 : i32, i32
  }
  func.func @transform_11(%arg0: i32) -> (i32, i32) {
    %c0_i32 = arith.constant 0 : i32
    %c0_i32_0 = arith.constant 0 : i32
    %c0_i32_1 = arith.constant 0 : i32
    return %c0_i32, %c0_i32_0 : i32, i32
  }
  func.func @transform_12(%arg0: i32) -> (i32, i32) {
    %c0_i32 = arith.constant 0 : i32
    %c0_i32_0 = arith.constant 0 : i32
    %c0_i32_1 = arith.constant 0 : i32
    return %c0_i32, %c0_i32_0 : i32, i32
  }
  func.func @transform_13(%arg0: i32) -> (i32, i32) {
    %c0_i32 = arith.constant 0 : i32
    %c0_i32_0 = arith.constant 0 : i32
    %c0_i32_1 = arith.constant 0 : i32
    return %c0_i32, %c0_i32_0 : i32, i32
  }
  func.func @transform_14(%arg0: i32) -> (i32, i32) {
    %c0_i32 = arith.constant 0 : i32
    %c0_i32_0 = arith.constant 0 : i32
    %c0_i32_1 = arith.constant 0 : i32
    return %c0_i32, %c0_i32_0 : i32, i32
  }
  func.func @transform_15(%arg0: i32) -> (i32, i32) {
    %c0_i32 = arith.constant 0 : i32
    %c0_i32_0 = arith.constant 0 : i32
    %c0_i32_1 = arith.constant 0 : i32
    return %c0_i32, %c0_i32_0 : i32, i32
  }
  func.func @transform_16(%arg0: i32) -> (i32, i32) {
    %c0_i32 = arith.constant 0 : i32
    %c0_i32_0 = arith.constant 0 : i32
    %c0_i32_1 = arith.constant 0 : i32
    return %c0_i32, %c0_i32_0 : i32, i32
  }
  func.func @transform_17(%arg0: i32) -> (i32, i32) {
    %c0_i32 = arith.constant 0 : i32
    %c0_i32_0 = arith.constant 0 : i32
    %c0_i32_1 = arith.constant 0 : i32
    return %c0_i32, %c0_i32_0 : i32, i32
  }
  func.func @transform_18(%arg0: i32) -> (i32, i32, i32) {
    %c0_i32 = arith.constant 0 : i32
    %c0_i32_0 = arith.constant 0 : i32
    %c0_i32_1 = arith.constant 0 : i32
    return %arg0, %c0_i32, %c0_i32_0 : i32, i32, i32
  }
  func.func @transform_19(%arg0: i32) -> (i32, i32, i32) {
    %c0_i32 = arith.constant 0 : i32
    %c0_i32_0 = arith.constant 0 : i32
    %c0_i32_1 = arith.constant 0 : i32
    return %arg0, %c0_i32, %c0_i32_0 : i32, i32, i32
  }
}

</mosaic_0001>

<llo_original>
// kernel: distiller_forward.1
$region0: #{distiller_forward.1}
  #allocation0 [shape = 'u32[]', space=smem, size = 0x4, offset = 0x4, fixed_abs, tag = 'smem constant byte address 0x4 - core index']
  #allocation1 [shape = 'u32[72,128]{1,0:T(1,128)}', space=vmem, size = 0x9000, scoped, tag = 'internal scratch']
  %s0 = inlined_call_operand.vmem [shape: bf16[2,256,4], index: 0, kind: input, shape index: {}]
  %s1 = inlined_call_operand.vmem [shape: bf16[4,16], index: 1, kind: input, shape index: {}]
  %s2 = inlined_call_operand.vmem [shape: f32[1,16], index: 2, kind: input, shape index: {}]
  %s3 = inlined_call_operand.vmem [shape: bf16[16,32], index: 3, kind: input, shape index: {}]
  %s4 = inlined_call_operand.vmem [shape: f32[1,32], index: 4, kind: input, shape index: {}]
  %s5 = inlined_call_operand.vmem [shape: bf16[32,64], index: 5, kind: input, shape index: {}]
  %s6 = inlined_call_operand.vmem [shape: f32[1,64], index: 6, kind: input, shape index: {}]
  %s7 = inlined_call_operand.vmem [shape: bf16[4,8], index: 7, kind: input, shape index: {}]
  %s8 = inlined_call_operand.vmem [shape: f32[1,8], index: 8, kind: input, shape index: {}]
  %s9 = inlined_call_operand.vmem [shape: bf16[8,16], index: 9, kind: input, shape index: {}]
  %s10 = inlined_call_operand.vmem [shape: f32[1,16], index: 10, kind: input, shape index: {}]
  %s11 = inlined_call_operand.vmem [shape: bf16[16,32], index: 11, kind: input, shape index: {}]
  %s12 = inlined_call_operand.vmem [shape: f32[1,32], index: 12, kind: input, shape index: {}]
  %s13 = inlined_call_operand.vmem [shape: bf16[8,16], index: 13, kind: input, shape index: {}]
  %s14 = inlined_call_operand.vmem [shape: bf16[16,32], index: 14, kind: input, shape index: {}]
  %s15 = inlined_call_operand.vmem [shape: bf16[32,64], index: 15, kind: input, shape index: {}]
  %s16 = inlined_call_operand.vmem [shape: bf16[32,10], index: 16, kind: input, shape index: {}]
  %s17 = inlined_call_operand.vmem [shape: f32[1,10], index: 17, kind: input, shape index: {}]
  %s18 = inlined_call_operand.hbm [shape: f32[2,1,10], index: 18, kind: output, shape index: {0}]
  %s19 = inlined_call_operand.vmem [shape: f32[2,1,1], index: 19, kind: output, shape index: {1}]
  %20 = xla_tuple %s18, %s19
  %s21 = sld [smem:[#allocation0]]
  $region113: #{distiller_forward.1} parent=0
    _
  %s23 = ssub.s32 1, %s21
  %s24 = scalar_select 0, %s23, %s21
  $region1: #{distiller_forward.1} parent=0
    #allocation2 [shape = 'u8[1024]{0}', space=vmem, size = 0x400, scoped, tag = 'output window, operand 0']
    #allocation3 [shape = 's32[2]{0}', space=sflag, size = 0x8, scoped, tag = 'scoped memory for distiller_forward.1']
    %25 = vsyncpa [#allocation3], 0
    %s26 = scalar_lea.sflag [#allocation3], 1
    %27 = vsyncpa %s26, 0
    loop: start=0, step=1, limit=4
    $region2: #{distiller_forward.1} parent=1 // loop_pre_header
      _
    $region3: #{distiller_forward.1} parent=1 // loop_header
      %s29 = sphi 0, %s33
      %p30 = scmp.ge.s32.totalorder %s29, 4
      %s39 = sphi 0, %s41
      %s42 = sphi 0, %s39
      %s43 = sphi 0, %s42
      %s59 = sphi 0, %s43
      %s63 = sphi 0, %s63
      %s65 = sphi 0, %s63
      %s66 = sphi 0, %s65
      %s80 = sphi 0, %s66
      %s84 = sphi 0, %s84
      %s86 = sphi 0, %s84
      %s87 = sphi 0, %s86
      %s101 = sphi 0, %s87
      %s105 = sphi 0, %s105
      %s107 = sphi 0, %s105
      %s108 = sphi 0, %s107
      %s122 = sphi 0, %s108
      %s126 = sphi 0, %s126
      %s128 = sphi 0, %s126
      %s129 = sphi 0, %s128
      %s143 = sphi 0, %s129
      %s147 = sphi 0, %s147
      %s149 = sphi 0, %s147
      %s150 = sphi 0, %s149
      %s164 = sphi 0, %s150
      %s168 = sphi 0, %s168
      %s170 = sphi 0, %s168
      %s171 = sphi 0, %s170
      %s185 = sphi 0, %s171
      %s189 = sphi 0, %s189
      %s191 = sphi 0, %s189
      %s192 = sphi 0, %s191
      %s206 = sphi 0, %s192
      %s210 = sphi 0, %s210
      %s212 = sphi 0, %s210
      %s213 = sphi 0, %s212
      %s227 = sphi 0, %s213
      %s231 = sphi 0, %s231
      %s233 = sphi 0, %s231
      %s234 = sphi 0, %s233
      %s248 = sphi 0, %s234
      %s252 = sphi 0, %s252
      %s254 = sphi 0, %s252
      %s255 = sphi 0, %s254
      %s269 = sphi 0, %s255
      %s273 = sphi 0, %s273
      %s275 = sphi 0, %s273
      %s276 = sphi 0, %s275
      %s290 = sphi 0, %s276
      %s294 = sphi 0, %s294
      %s296 = sphi 0, %s294
      %s297 = sphi 0, %s296
      %s311 = sphi 0, %s297
      %s315 = sphi 0, %s315
      %s317 = sphi 0, %s315
      %s318 = sphi 0, %s317
      %s332 = sphi 0, %s318
      %s336 = sphi 0, %s336
      %s338 = sphi 0, %s336
      %s339 = sphi 0, %s338
      %s353 = sphi 0, %s339
      %s357 = sphi 0, %s357
      %s359 = sphi 0, %s357
      %s360 = sphi 0, %s359
      %s374 = sphi 0, %s360
      %s378 = sphi 0, %s378
      %s380 = sphi 0, %s378
      %s381 = sphi 0, %s380
      %s395 = sphi 0, %s381
      %s399 = sphi 0, %s399
      %s401 = sphi 0, %s399
      %s402 = sphi 0, %s401
      %s416 = sphi 0, %s402
      %s422 = sphi 0, %s424
      %s425 = sphi 0, %s422
      %s426 = sphi 0, %s425
      %s442 = sphi 0, %s426
      %s448 = sphi 0, %s450
      %s451 = sphi 0, %s448
      %s452 = sphi 0, %s451
      %s468 = sphi 0, %s452
    $region4: #{distiller_forward.1} parent=1 // loop_header_branch
      %32 = sbr.rel (%p30) target = $region8
    $region5: #{distiller_forward.1} parent=1 // loop_body
      %s34 = ssub.s32 %s29, 1
      %s35 = ssub.s32 %s29, 2
      %s36 = sadd.s32 %s29, 1
      %s37 = ssub.s32 %s29, %s36
      %p38 = scmp.eq.s32.totalorder %s37, 0
      %s40 = sadd.s32 %s39, 1
      %s41 = scalar_select %p38, %s39, %s40
      %p44 = pneg %p38
      %p45 = scmp.eq.s32.totalorder %s29, 1
      %p46 = por %p44, %p45
      %p47 = scmp.ne.s32.totalorder %s39, %s42
      %p48 = scmp.eq.s32.totalorder %s29, 0
      %p49 = por %p47, %p48
      %p50 = scmp.ne.s32.totalorder %s39, %s42
      %p51 = scmp.eq.s32.totalorder %s34, 1
      %p52 = por %p50, %p51
      %p53 = scmp.ne.s32.totalorder %s42, %s43
      %p54 = scmp.eq.s32.totalorder %s34, 0
      %p55 = por %p53, %p54
      %p56 = scmp.ne.s32.totalorder %s42, %s43
      %p57 = scmp.eq.s32.totalorder %s35, 1
      %p58 = por %p56, %p57
      %p60 = scmp.ne.s32.totalorder %s43, %s59
      %p61 = scmp.eq.s32.totalorder %s35, 0
      %p62 = por %p60, %p61
      %s64 = sadd.s32 %s63, 1
      %p67 = scmp.eq.s32.totalorder %s29, 1
      %p68 = scmp.ne.s32.totalorder %s63, %s65
      %p69 = scmp.eq.s32.totalorder %s29, 0
      %p70 = por %p68, %p69
      %p71 = scmp.ne.s32.totalorder %s63, %s65
      %p72 = scmp.eq.s32.totalorder %s34, 1
      %p73 = por %p71, %p72
      %p74 = scmp.ne.s32.totalorder %s65, %s66
      %p75 = scmp.eq.s32.totalorder %s34, 0
      %p76 = por %p74, %p75
      %p77 = scmp.ne.s32.totalorder %s65, %s66
      %p78 = scmp.eq.s32.totalorder %s35, 1
      %p79 = por %p77, %p78
      %p81 = scmp.ne.s32.totalorder %s66, %s80
      %p82 = scmp.eq.s32.totalorder %s35, 0
      %p83 = por %p81, %p82
      %s85 = sadd.s32 %s84, 1
      %p88 = scmp.eq.s32.totalorder %s29, 1
      %p89 = scmp.ne.s32.totalorder %s84, %s86
      %p90 = scmp.eq.s32.totalorder %s29, 0
      %p91 = por %p89, %p90
      %p92 = scmp.ne.s32.totalorder %s84, %s86
      %p93 = scmp.eq.s32.totalorder %s34, 1
      %p94 = por %p92, %p93
      %p95 = scmp.ne.s32.totalorder %s86, %s87
      %p96 = scmp.eq.s32.totalorder %s34, 0
      %p97 = por %p95, %p96
      %p98 = scmp.ne.s32.totalorder %s86, %s87
      %p99 = scmp.eq.s32.totalorder %s35, 1
      %p100 = por %p98, %p99
      %p102 = scmp.ne.s32.totalorder %s87, %s101
      %p103 = scmp.eq.s32.totalorder %s35, 0
      %p104 = por %p102, %p103
      %s106 = sadd.s32 %s105, 1
      %p109 = scmp.eq.s32.totalorder %s29, 1
      %p110 = scmp.ne.s32.totalorder %s105, %s107
      %p111 = scmp.eq.s32.totalorder %s29, 0
      %p112 = por %p110, %p111
      %p113 = scmp.ne.s32.totalorder %s105, %s107
      %p114 = scmp.eq.s32.totalorder %s34, 1
      %p115 = por %p113, %p114
      %p116 = scmp.ne.s32.totalorder %s107, %s108
      %p117 = scmp.eq.s32.totalorder %s34, 0
      %p118 = por %p116, %p117
      %p119 = scmp.ne.s32.totalorder %s107, %s108
      %p120 = scmp.eq.s32.totalorder %s35, 1
      %p121 = por %p119, %p120
      %p123 = scmp.ne.s32.totalorder %s108, %s122
      %p124 = scmp.eq.s32.totalorder %s35, 0
      %p125 = por %p123, %p124
      %s127 = sadd.s32 %s126, 1
      %p130 = scmp.eq.s32.totalorder %s29, 1
      %p131 = scmp.ne.s32.totalorder %s126, %s128
      %p132 = scmp.eq.s32.totalorder %s29, 0
      %p133 = por %p131, %p132
      %p134 = scmp.ne.s32.totalorder %s126, %s128
      %p135 = scmp.eq.s32.totalorder %s34, 1
      %p136 = por %p134, %p135
      %p137 = scmp.ne.s32.totalorder %s128, %s129
      %p138 = scmp.eq.s32.totalorder %s34, 0
      %p139 = por %p137, %p138
      %p140 = scmp.ne.s32.totalorder %s128, %s129
      %p141 = scmp.eq.s32.totalorder %s35, 1
      %p142 = por %p140, %p141
      %p144 = scmp.ne.s32.totalorder %s129, %s143
      %p145 = scmp.eq.s32.totalorder %s35, 0
      %p146 = por %p144, %p145
      %s148 = sadd.s32 %s147, 1
      %p151 = scmp.eq.s32.totalorder %s29, 1
      %p152 = scmp.ne.s32.totalorder %s147, %s149
      %p153 = scmp.eq.s32.totalorder %s29, 0
      %p154 = por %p152, %p153
      %p155 = scmp.ne.s32.totalorder %s147, %s149
      %p156 = scmp.eq.s32.totalorder %s34, 1
      %p157 = por %p155, %p156
      %p158 = scmp.ne.s32.totalorder %s149, %s150
      %p159 = scmp.eq.s32.totalorder %s34, 0
      %p160 = por %p158, %p159
      %p161 = scmp.ne.s32.totalorder %s149, %s150
      %p162 = scmp.eq.s32.totalorder %s35, 1
      %p163 = por %p161, %p162
      %p165 = scmp.ne.s32.totalorder %s150, %s164
      %p166 = scmp.eq.s32.totalorder %s35, 0
      %p167 = por %p165, %p166
      %s169 = sadd.s32 %s168, 1
      %p172 = scmp.eq.s32.totalorder %s29, 1
      %p173 = scmp.ne.s32.totalorder %s168, %s170
      %p174 = scmp.eq.s32.totalorder %s29, 0
      %p175 = por %p173, %p174
      %p176 = scmp.ne.s32.totalorder %s168, %s170
      %p177 = scmp.eq.s32.totalorder %s34, 1
      %p178 = por %p176, %p177
      %p179 = scmp.ne.s32.totalorder %s170, %s171
      %p180 = scmp.eq.s32.totalorder %s34, 0
      %p181 = por %p179, %p180
      %p182 = scmp.ne.s32.totalorder %s170, %s171
      %p183 = scmp.eq.s32.totalorder %s35, 1
      %p184 = por %p182, %p183
      %p186 = scmp.ne.s32.totalorder %s171, %s185
      %p187 = scmp.eq.s32.totalorder %s35, 0
      %p188 = por %p186, %p187
      %s190 = sadd.s32 %s189, 1
      %p193 = scmp.eq.s32.totalorder %s29, 1
      %p194 = scmp.ne.s32.totalorder %s189, %s191
      %p195 = scmp.eq.s32.totalorder %s29, 0
      %p196 = por %p194, %p195
      %p197 = scmp.ne.s32.totalorder %s189, %s191
      %p198 = scmp.eq.s32.totalorder %s34, 1
      %p199 = por %p197, %p198
      %p200 = scmp.ne.s32.totalorder %s191, %s192
      %p201 = scmp.eq.s32.totalorder %s34, 0
      %p202 = por %p200, %p201
      %p203 = scmp.ne.s32.totalorder %s191, %s192
      %p204 = scmp.eq.s32.totalorder %s35, 1
      %p205 = por %p203, %p204
      %p207 = scmp.ne.s32.totalorder %s192, %s206
      %p208 = scmp.eq.s32.totalorder %s35, 0
      %p209 = por %p207, %p208
      %s211 = sadd.s32 %s210, 1
      %p214 = scmp.eq.s32.totalorder %s29, 1
      %p215 = scmp.ne.s32.totalorder %s210, %s212
      %p216 = scmp.eq.s32.totalorder %s29, 0
      %p217 = por %p215, %p216
      %p218 = scmp.ne.s32.totalorder %s210, %s212
      %p219 = scmp.eq.s32.totalorder %s34, 1
      %p220 = por %p218, %p219
      %p221 = scmp.ne.s32.totalorder %s212, %s213
      %p222 = scmp.eq.s32.totalorder %s34, 0
      %p223 = por %p221, %p222
      %p224 = scmp.ne.s32.totalorder %s212, %s213
      %p225 = scmp.eq.s32.totalorder %s35, 1
      %p226 = por %p224, %p225
      %p228 = scmp.ne.s32.totalorder %s213, %s227
      %p229 = scmp.eq.s32.totalorder %s35, 0
      %p230 = por %p228, %p229
      %s232 = sadd.s32 %s231, 1
      %p235 = scmp.eq.s32.totalorder %s29, 1
      %p236 = scmp.ne.s32.totalorder %s231, %s233
      %p237 = scmp.eq.s32.totalorder %s29, 0
      %p238 = por %p236, %p237
      %p239 = scmp.ne.s32.totalorder %s231, %s233
      %p240 = scmp.eq.s32.totalorder %s34, 1
      %p241 = por %p239, %p240
      %p242 = scmp.ne.s32.totalorder %s233, %s234
      %p243 = scmp.eq.s32.totalorder %s34, 0
      %p244 = por %p242, %p243
      %p245 = scmp.ne.s32.totalorder %s233, %s234
      %p246 = scmp.eq.s32.totalorder %s35, 1
      %p247 = por %p245, %p246
      %p249 = scmp.ne.s32.totalorder %s234, %s248
      %p250 = scmp.eq.s32.totalorder %s35, 0
      %p251 = por %p249, %p250
      %s253 = sadd.s32 %s252, 1
      %p256 = scmp.eq.s32.totalorder %s29, 1
      %p257 = scmp.ne.s32.totalorder %s252, %s254
      %p258 = scmp.eq.s32.totalorder %s29, 0
      %p259 = por %p257, %p258
      %p260 = scmp.ne.s32.totalorder %s252, %s254
      %p261 = scmp.eq.s32.totalorder %s34, 1
      %p262 = por %p260, %p261
      %p263 = scmp.ne.s32.totalorder %s254, %s255
      %p264 = scmp.eq.s32.totalorder %s34, 0
      %p265 = por %p263, %p264
      %p266 = scmp.ne.s32.totalorder %s254, %s255
      %p267 = scmp.eq.s32.totalorder %s35, 1
      %p268 = por %p266, %p267
      %p270 = scmp.ne.s32.totalorder %s255, %s269
      %p271 = scmp.eq.s32.totalorder %s35, 0
      %p272 = por %p270, %p271
      %s274 = sadd.s32 %s273, 1
      %p277 = scmp.eq.s32.totalorder %s29, 1
      %p278 = scmp.ne.s32.totalorder %s273, %s275
      %p279 = scmp.eq.s32.totalorder %s29, 0
      %p280 = por %p278, %p279
      %p281 = scmp.ne.s32.totalorder %s273, %s275
      %p282 = scmp.eq.s32.totalorder %s34, 1
      %p283 = por %p281, %p282
      %p284 = scmp.ne.s32.totalorder %s275, %s276
      %p285 = scmp.eq.s32.totalorder %s34, 0
      %p286 = por %p284, %p285
      %p287 = scmp.ne.s32.totalorder %s275, %s276
      %p288 = scmp.eq.s32.totalorder %s35, 1
      %p289 = por %p287, %p288
      %p291 = scmp.ne.s32.totalorder %s276, %s290
      %p292 = scmp.eq.s32.totalorder %s35, 0
      %p293 = por %p291, %p292
      %s295 = sadd.s32 %s294, 1
      %p298 = scmp.eq.s32.totalorder %s29, 1
      %p299 = scmp.ne.s32.totalorder %s294, %s296
      %p300 = scmp.eq.s32.totalorder %s29, 0
      %p301 = por %p299, %p300
      %p302 = scmp.ne.s32.totalorder %s294, %s296
      %p303 = scmp.eq.s32.totalorder %s34, 1
      %p304 = por %p302, %p303
      %p305 = scmp.ne.s32.totalorder %s296, %s297
      %p306 = scmp.eq.s32.totalorder %s34, 0
      %p307 = por %p305, %p306
      %p308 = scmp.ne.s32.totalorder %s296, %s297
      %p309 = scmp.eq.s32.totalorder %s35, 1
      %p310 = por %p308, %p309
      %p312 = scmp.ne.s32.totalorder %s297, %s311
      %p313 = scmp.eq.s32.totalorder %s35, 0
      %p314 = por %p312, %p313
      %s316 = sadd.s32 %s315, 1
      %p319 = scmp.eq.s32.totalorder %s29, 1
      %p320 = scmp.ne.s32.totalorder %s315, %s317
      %p321 = scmp.eq.s32.totalorder %s29, 0
      %p322 = por %p320, %p321
      %p323 = scmp.ne.s32.totalorder %s315, %s317
      %p324 = scmp.eq.s32.totalorder %s34, 1
      %p325 = por %p323, %p324
      %p326 = scmp.ne.s32.totalorder %s317, %s318
      %p327 = scmp.eq.s32.totalorder %s34, 0
      %p328 = por %p326, %p327
      %p329 = scmp.ne.s32.totalorder %s317, %s318
      %p330 = scmp.eq.s32.totalorder %s35, 1
      %p331 = por %p329, %p330
      %p333 = scmp.ne.s32.totalorder %s318, %s332
      %p334 = scmp.eq.s32.totalorder %s35, 0
      %p335 = por %p333, %p334
      %s337 = sadd.s32 %s336, 1
      %p340 = scmp.eq.s32.totalorder %s29, 1
      %p341 = scmp.ne.s32.totalorder %s336, %s338
      %p342 = scmp.eq.s32.totalorder %s29, 0
      %p343 = por %p341, %p342
      %p344 = scmp.ne.s32.totalorder %s336, %s338
      %p345 = scmp.eq.s32.totalorder %s34, 1
      %p346 = por %p344, %p345
      %p347 = scmp.ne.s32.totalorder %s338, %s339
      %p348 = scmp.eq.s32.totalorder %s34, 0
      %p349 = por %p347, %p348
      %p350 = scmp.ne.s32.totalorder %s338, %s339
      %p351 = scmp.eq.s32.totalorder %s35, 1
      %p352 = por %p350, %p351
      %p354 = scmp.ne.s32.totalorder %s339, %s353
      %p355 = scmp.eq.s32.totalorder %s35, 0
      %p356 = por %p354, %p355
      %s358 = sadd.s32 %s357, 1
      %p361 = scmp.eq.s32.totalorder %s29, 1
      %p362 = scmp.ne.s32.totalorder %s357, %s359
      %p363 = scmp.eq.s32.totalorder %s29, 0
      %p364 = por %p362, %p363
      %p365 = scmp.ne.s32.totalorder %s357, %s359
      %p366 = scmp.eq.s32.totalorder %s34, 1
      %p367 = por %p365, %p366
      %p368 = scmp.ne.s32.totalorder %s359, %s360
      %p369 = scmp.eq.s32.totalorder %s34, 0
      %p370 = por %p368, %p369
      %p371 = scmp.ne.s32.totalorder %s359, %s360
      %p372 = scmp.eq.s32.totalorder %s35, 1
      %p373 = por %p371, %p372
      %p375 = scmp.ne.s32.totalorder %s360, %s374
      %p376 = scmp.eq.s32.totalorder %s35, 0
      %p377 = por %p375, %p376
      %s379 = sadd.s32 %s378, 1
      %p382 = scmp.eq.s32.totalorder %s29, 1
      %p383 = scmp.ne.s32.totalorder %s378, %s380
      %p384 = scmp.eq.s32.totalorder %s29, 0
      %p385 = por %p383, %p384
      %p386 = scmp.ne.s32.totalorder %s378, %s380
      %p387 = scmp.eq.s32.totalorder %s34, 1
      %p388 = por %p386, %p387
      %p389 = scmp.ne.s32.totalorder %s380, %s381
      %p390 = scmp.eq.s32.totalorder %s34, 0
      %p391 = por %p389, %p390
      %p392 = scmp.ne.s32.totalorder %s380, %s381
      %p393 = scmp.eq.s32.totalorder %s35, 1
      %p394 = por %p392, %p393
      %p396 = scmp.ne.s32.totalorder %s381, %s395
      %p397 = scmp.eq.s32.totalorder %s35, 0
      %p398 = por %p396, %p397
      %s400 = sadd.s32 %s399, 1
      %p403 = scmp.eq.s32.totalorder %s29, 1
      %p404 = scmp.ne.s32.totalorder %s399, %s401
      %p405 = scmp.eq.s32.totalorder %s29, 0
      %p406 = por %p404, %p405
      %p407 = scmp.ne.s32.totalorder %s399, %s401
      %p408 = scmp.eq.s32.totalorder %s34, 1
      %p409 = por %p407, %p408
      %p410 = scmp.ne.s32.totalorder %s401, %s402
      %p411 = scmp.eq.s32.totalorder %s34, 0
      %p412 = por %p410, %p411
      %p413 = scmp.ne.s32.totalorder %s401, %s402
      %p414 = scmp.eq.s32.totalorder %s35, 1
      %p415 = por %p413, %p414
      %p417 = scmp.ne.s32.totalorder %s402, %s416
      %p418 = scmp.eq.s32.totalorder %s35, 0
      %p419 = por %p417, %p418
      %s420 = ssub.s32 %s29, %s36
      %p421 = scmp.eq.s32.totalorder %s420, 0
      %s423 = sadd.s32 %s422, 1
      %s424 = scalar_select %p421, %s422, %s423
      %p427 = pneg %p421
      %p428 = scmp.eq.s32.totalorder %s29, 1
      %p429 = por %p427, %p428
      %p430 = scmp.ne.s32.totalorder %s422, %s425
      %p431 = scmp.eq.s32.totalorder %s29, 0
      %p432 = por %p430, %p431
      %p433 = scmp.ne.s32.totalorder %s422, %s425
      %p434 = scmp.eq.s32.totalorder %s34, 1
      %p435 = por %p433, %p434
      %p436 = scmp.ne.s32.totalorder %s425, %s426
      %p437 = scmp.eq.s32.totalorder %s34, 0
      %p438 = por %p436, %p437
      %p439 = scmp.ne.s32.totalorder %s425, %s426
      %p440 = scmp.eq.s32.totalorder %s35, 1
      %p441 = por %p439, %p440
      %p443 = scmp.ne.s32.totalorder %s426, %s442
      %p444 = scmp.eq.s32.totalorder %s35, 0
      %p445 = por %p443, %p444
      %s446 = ssub.s32 %s29, %s36
      %p447 = scmp.eq.s32.totalorder %s446, 0
      %s449 = sadd.s32 %s448, 1
      %s450 = scalar_select %p447, %s448, %s449
      %p453 = pneg %p447
      %p454 = scmp.eq.s32.totalorder %s29, 1
      %p455 = por %p453, %p454
      %p456 = scmp.ne.s32.totalorder %s448, %s451
      %p457 = scmp.eq.s32.totalorder %s29, 0
      %p458 = por %p456, %p457
      %p459 = scmp.ne.s32.totalorder %s448, %s451
      %p460 = scmp.eq.s32.totalorder %s34, 1
      %p461 = por %p459, %p460
      %p462 = scmp.ne.s32.totalorder %s451, %s452
      %p463 = scmp.eq.s32.totalorder %s34, 0
      %p464 = por %p462, %p463
      %p465 = scmp.ne.s32.totalorder %s451, %s452
      %p466 = scmp.eq.s32.totalorder %s35, 1
      %p467 = por %p465, %p466
      %p469 = scmp.ne.s32.totalorder %s452, %s468
      %p470 = scmp.eq.s32.totalorder %s35, 0
      %p471 = por %p469, %p470
      %p472 = scmp.le.s32.totalorder 1, %s29
      %p473 = scmp.lt.s32.totalorder %s29, 3
      %p474 = pnand %p472, %p473
      %p475 = pneg %p474
      // Predicated region
      $region9: #{distiller_forward.1} parent=5 // pred_check
        _
      $region10: #{distiller_forward.1} parent=5 // pred_check_branch
        %477 = sbr.rel (%p474) target = $region12
      $region11: #{distiller_forward.1} parent=5 // pred_region
        %s478 = ssub.s32 %s29, 1
        // Predicated region
        $region13: #{distiller_forward.1} parent=11 // pred_check
          %p479 = pneg %p76
        $region14: #{distiller_forward.1} parent=11 // pred_check_branch
          %481 = sbr.rel (%p479) target = $region16
        $region15: #{distiller_forward.1} parent=11 // pred_region
          _
        $region16: #{distiller_forward.1} parent=11 // pred_fallthru
          _
        // Predicated region
        $region17: #{distiller_forward.1} parent=11 // pred_check
          %p482 = pneg %p97
        $region18: #{distiller_forward.1} parent=11 // pred_check_branch
          %484 = sbr.rel (%p482) target = $region20
        $region19: #{distiller_forward.1} parent=11 // pred_region
          _
        $region20: #{distiller_forward.1} parent=11 // pred_fallthru
          _
        // Predicated region
        $region21: #{distiller_forward.1} parent=11 // pred_check
          %p485 = pneg %p118
        $region22: #{distiller_forward.1} parent=11 // pred_check_branch
          %487 = sbr.rel (%p485) target = $region24
        $region23: #{distiller_forward.1} parent=11 // pred_region
          _
        $region24: #{distiller_forward.1} parent=11 // pred_fallthru
          _
        // Predicated region
        $region25: #{distiller_forward.1} parent=11 // pred_check
          %p488 = pneg %p139
        $region26: #{distiller_forward.1} parent=11 // pred_check_branch
          %490 = sbr.rel (%p488) target = $region28
        $region27: #{distiller_forward.1} parent=11 // pred_region
          _
        $region28: #{distiller_forward.1} parent=11 // pred_fallthru
          _
        // Predicated region
        $region29: #{distiller_forward.1} parent=11 // pred_check
          %p491 = pneg %p160
        $region30: #{distiller_forward.1} parent=11 // pred_check_branch
          %493 = sbr.rel (%p491) target = $region32
        $region31: #{distiller_forward.1} parent=11 // pred_region
          _
        $region32: #{distiller_forward.1} parent=11 // pred_fallthru
          _
        // Predicated region
        $region33: #{distiller_forward.1} parent=11 // pred_check
          %p494 = pneg %p181
        $region34: #{distiller_forward.1} parent=11 // pred_check_branch
          %496 = sbr.rel (%p494) target = $region36
        $region35: #{distiller_forward.1} parent=11 // pred_region
          _
        $region36: #{distiller_forward.1} parent=11 // pred_fallthru
          _
        // Predicated region
        $region37: #{distiller_forward.1} parent=11 // pred_check
          %p497 = pneg %p202
        $region38: #{distiller_forward.1} parent=11 // pred_check_branch
          %499 = sbr.rel (%p497) target = $region40
        $region39: #{distiller_forward.1} parent=11 // pred_region
          _
        $region40: #{distiller_forward.1} parent=11 // pred_fallthru
          _
        // Predicated region
        $region41: #{distiller_forward.1} parent=11 // pred_check
          %p500 = pneg %p223
        $region42: #{distiller_forward.1} parent=11 // pred_check_branch
          %502 = sbr.rel (%p500) target = $region44
        $region43: #{distiller_forward.1} parent=11 // pred_region
          _
        $region44: #{distiller_forward.1} parent=11 // pred_fallthru
          _
        // Predicated region
        $region45: #{distiller_forward.1} parent=11 // pred_check
          %p503 = pneg %p244
        $region46: #{distiller_forward.1} parent=11 // pred_check_branch
          %505 = sbr.rel (%p503) target = $region48
        $region47: #{distiller_forward.1} parent=11 // pred_region
          _
        $region48: #{distiller_forward.1} parent=11 // pred_fallthru
          _
        // Predicated region
        $region49: #{distiller_forward.1} parent=11 // pred_check
          %p506 = pneg %p265
        $region50: #{distiller_forward.1} parent=11 // pred_check_branch
          %508 = sbr.rel (%p506) target = $region52
        $region51: #{distiller_forward.1} parent=11 // pred_region
          _
        $region52: #{distiller_forward.1} parent=11 // pred_fallthru
          _
        // Predicated region
        $region53: #{distiller_forward.1} parent=11 // pred_check
          %p509 = pneg %p286
        $region54: #{distiller_forward.1} parent=11 // pred_check_branch
          %511 = sbr.rel (%p509) target = $region56
        $region55: #{distiller_forward.1} parent=11 // pred_region
          _
        $region56: #{distiller_forward.1} parent=11 // pred_fallthru
          _
        // Predicated region
        $region57: #{distiller_forward.1} parent=11 // pred_check
          %p512 = pneg %p307
        $region58: #{distiller_forward.1} parent=11 // pred_check_branch
          %514 = sbr.rel (%p512) target = $region60
        $region59: #{distiller_forward.1} parent=11 // pred_region
          _
        $region60: #{distiller_forward.1} parent=11 // pred_fallthru
          _
        // Predicated region
        $region61: #{distiller_forward.1} parent=11 // pred_check
          %p515 = pneg %p328
        $region62: #{distiller_forward.1} parent=11 // pred_check_branch
          %517 = sbr.rel (%p515) target = $region64
        $region63: #{distiller_forward.1} parent=11 // pred_region
          _
        $region64: #{distiller_forward.1} parent=11 // pred_fallthru
          _
        // Predicated region
        $region65: #{distiller_forward.1} parent=11 // pred_check
          %p518 = pneg %p349
        $region66: #{distiller_forward.1} parent=11 // pred_check_branch
          %520 = sbr.rel (%p518) target = $region68
        $region67: #{distiller_forward.1} parent=11 // pred_region
          _
        $region68: #{distiller_forward.1} parent=11 // pred_fallthru
          _
        // Predicated region
        $region69: #{distiller_forward.1} parent=11 // pred_check
          %p521 = pneg %p370
        $region70: #{distiller_forward.1} parent=11 // pred_check_branch
          %523 = sbr.rel (%p521) target = $region72
        $region71: #{distiller_forward.1} parent=11 // pred_region
          _
        $region72: #{distiller_forward.1} parent=11 // pred_fallthru
          _
        // Predicated region
        $region73: #{distiller_forward.1} parent=11 // pred_check
          %p524 = pneg %p391
        $region74: #{distiller_forward.1} parent=11 // pred_check_branch
          %526 = sbr.rel (%p524) target = $region76
        $region75: #{distiller_forward.1} parent=11 // pred_region
          _
        $region76: #{distiller_forward.1} parent=11 // pred_fallthru
          _
        // Predicated region
        $region77: #{distiller_forward.1} parent=11 // pred_check
          %p527 = pneg %p412
        $region78: #{distiller_forward.1} parent=11 // pred_check_branch
          %529 = sbr.rel (%p527) target = $region80
        $region79: #{distiller_forward.1} parent=11 // pred_region
          _
        $region80: #{distiller_forward.1} parent=11 // pred_fallthru
          _
      $region12: #{distiller_forward.1} parent=5 // pred_fallthru
        _
      %p530 = scmp.lt.s32.totalorder %s29, 2
      // Predicated region
      $region81: #{distiller_forward.1} parent=5 // pred_check
        %p531 = pneg %p530
      $region82: #{distiller_forward.1} parent=5 // pred_check_branch
        %533 = sbr.rel (%p531) target = $region84
      $region83: #{distiller_forward.1} parent=5 // pred_region
        // Predicated region
        $region85: #{distiller_forward.1} parent=83 // pred_check
          %p534 = pneg %p49
        $region86: #{distiller_forward.1} parent=83 // pred_check_branch
          %536 = sbr.rel (%p534) target = $region88
        $region87: #{distiller_forward.1} parent=83 // pred_region
          %p537 = scmp.lt.s32.totalorder %s29, 1
          %s538 = scalar_select %p537, %s29, 1
          %s539 = smul.addr %s538, 32
          %s540 = smul.addr %s539, 4
          %s541 = scalar_lea.vmem %s0, %s540
        $region88: #{distiller_forward.1} parent=83 // pred_fallthru
          _
      $region84: #{distiller_forward.1} parent=5 // pred_fallthru
        _
      %p542 = scmp.le.s32.totalorder 1, %s29
      %p543 = scmp.lt.s32.totalorder %s29, 3
      %p544 = pnand %p542, %p543
      %p545 = pneg %p544
      // Predicated region
      $region89: #{distiller_forward.1} parent=5 // pred_check
        _
      $region90: #{distiller_forward.1} parent=5 // pred_check_branch
        %547 = sbr.rel (%p544) target = $region92
      $region91: #{distiller_forward.1} parent=5 // pred_region
        %s548 = ssub.s32 %s29, 1
        %p549 = scmp.lt.s32.totalorder %s34, 1
        %s550 = scalar_select %p549, %s34, 1
        %s551 = smul.addr %s550, 32
        %s552 = smul.addr %s551, 4
        %s553 = scalar_lea.vmem %s0, %s552
        %p554 = pneg %p55
        %p555 = pneg %p52
        %p556 = pneg %p76
        %p557 = pneg %p73
        %p558 = pneg %p97
        %p559 = pneg %p94
        %p560 = pneg %p118
        %p561 = pneg %p115
        %p562 = pneg %p139
        %p563 = pneg %p136
        %p564 = pneg %p160
        %p565 = pneg %p157
        %p566 = pneg %p181
        %p567 = pneg %p178
        %p568 = pneg %p202
        %p569 = pneg %p199
        %p570 = pneg %p223
        %p571 = pneg %p220
        %p572 = pneg %p244
        %p573 = pneg %p241
        %p574 = pneg %p265
        %p575 = pneg %p262
        %p576 = pneg %p286
        %p577 = pneg %p283
        %p578 = pneg %p307
        %p579 = pneg %p304
        %p580 = pneg %p328
        %p581 = pneg %p325
        %p582 = pneg %p349
        %p583 = pneg %p346
        %p584 = pneg %p370
        %p585 = pneg %p367
        %p586 = pneg %p391
        %p587 = pneg %p388
        %p588 = pneg %p412
        %p589 = pneg %p409
        %p590 = pneg %p438
        %p591 = pneg %p435
        %s592 = sand.u32 %s425, 1
        %s593 = scalar_lea.sflag [#allocation3], %s592
        %s594 = sand.u32 %s425, 1
        %s595 = scalar_lea.vmem [#allocation2], %s594
        %p596 = pneg %p464
        %p597 = pneg %p461
        %p598 = scmp.lt.s32.totalorder %s34, 1
        %s599 = scalar_select %p598, %s34, 1
        %s600 = scalar_lea.vmem %s19, %s599
        %p601 = scmp.lt.s32.totalorder %s34, 1
        %s602 = scalar_select %p601, %s34, 1
        %s603 = smul.addr %s602, 32
        %s604 = smul.addr %s603, 4
        %s605 = scalar_lea.vmem %s0, %s604
        %p606 = scmp.lt.s32.totalorder %s34, 1
        %s607 = scalar_select %p606, %s34, 1
        %s608 = scalar_lea.vmem %s19, %s607
        %v610 = vld [vmem:[%s605] sm:$0xf]
        %v611 = vld [vmem:[%s605 + $0x4] sm:$0xf]
        %v612 = vld [vmem:[%s605 + $0x8] sm:$0xf]
        %v613 = vld [vmem:[%s605 + $0xc] sm:$0xf]
        %v614 = vld [vmem:[%s605 + $0x10] sm:$0xf]
        %v615 = vld [vmem:[%s605 + $0x14] sm:$0xf]
        %v616 = vld [vmem:[%s605 + $0x18] sm:$0xf]
        %v617 = vld [vmem:[%s605 + $0x1c] sm:$0xf]
        %v618 = vld [vmem:[%s605 + $0x20] sm:$0xf]
        %v619 = vld [vmem:[%s605 + $0x24] sm:$0xf]
        %v620 = vld [vmem:[%s605 + $0x28] sm:$0xf]
        %v621 = vld [vmem:[%s605 + $0x2c] sm:$0xf]
        %v622 = vld [vmem:[%s605 + $0x30] sm:$0xf]
        %v623 = vld [vmem:[%s605 + $0x34] sm:$0xf]
        %v624 = vld [vmem:[%s605 + $0x38] sm:$0xf]
        %v625 = vld [vmem:[%s605 + $0x3c] sm:$0xf]
        %v626 = vld [vmem:[%s605 + $0x40] sm:$0xf]
        %v627 = vld [vmem:[%s605 + $0x44] sm:$0xf]
        %v628 = vld [vmem:[%s605 + $0x48] sm:$0xf]
        %v629 = vld [vmem:[%s605 + $0x4c] sm:$0xf]
        %v630 = vld [vmem:[%s605 + $0x50] sm:$0xf]
        %v631 = vld [vmem:[%s605 + $0x54] sm:$0xf]
        %v632 = vld [vmem:[%s605 + $0x58] sm:$0xf]
        %v633 = vld [vmem:[%s605 + $0x5c] sm:$0xf]
        %v634 = vld [vmem:[%s605 + $0x60] sm:$0xf]
        %v635 = vld [vmem:[%s605 + $0x64] sm:$0xf]
        %v636 = vld [vmem:[%s605 + $0x68] sm:$0xf]
        %v637 = vld [vmem:[%s605 + $0x6c] sm:$0xf]
        %v638 = vld [vmem:[%s605 + $0x70] sm:$0xf]
        %v639 = vld [vmem:[%s605 + $0x74] sm:$0xf]
        %v640 = vld [vmem:[%s605 + $0x78] sm:$0xf]
        %v641 = vld [vmem:[%s605 + $0x7c] sm:$0xf]
        %v642 = vld [vmem:[%s1] sm:$0x3]
        %v643 = vld [vmem:[%s2] sm:$0x1]
        %v644 = vld [vmem:[%s7] sm:$0x3]
        %v645 = vld [vmem:[%s8] sm:$0x1]
        %v646 = vld [vmem:[%s13] sm:$0xf]
        %v648 = vperm.slane %v643, 0
        %v682 = vunpack.c.l.b16 %v610
        %v683 = vunpack.c.l.b16 %v611
        %v684 = vunpack.c.l.b16 %v612
        %v685 = vunpack.c.l.b16 %v613
        %v686 = vunpack.c.l.b16 %v614
        %v687 = vunpack.c.l.b16 %v615
        %v688 = vunpack.c.l.b16 %v616
        %v689 = vunpack.c.l.b16 %v617
        %v690 = vunpack.c.l.b16 %v618
        %v691 = vunpack.c.l.b16 %v619
        %v692 = vunpack.c.l.b16 %v620
        %v693 = vunpack.c.l.b16 %v621
        %v694 = vunpack.c.l.b16 %v622
        %v695 = vunpack.c.l.b16 %v623
        %v696 = vunpack.c.l.b16 %v624
        %v697 = vunpack.c.l.b16 %v625
        %v698 = vunpack.c.l.b16 %v626
        %v699 = vunpack.c.l.b16 %v627
        %v700 = vunpack.c.l.b16 %v628
        %v701 = vunpack.c.l.b16 %v629
        %v702 = vunpack.c.l.b16 %v630
        %v703 = vunpack.c.l.b16 %v631
        %v704 = vunpack.c.l.b16 %v632
        %v705 = vunpack.c.l.b16 %v633
        %v706 = vunpack.c.l.b16 %v634
        %v707 = vunpack.c.l.b16 %v635
        %v708 = vunpack.c.l.b16 %v636
        %v709 = vunpack.c.l.b16 %v637
        %v710 = vunpack.c.l.b16 %v638
        %v711 = vunpack.c.l.b16 %v639
        %v712 = vunpack.c.l.b16 %v640
        %v713 = vunpack.c.l.b16 %v641
        %v714 = vpack.c.b16 %v683, %v682
        %v715 = vpack.c.b16 %v685, %v684
        %v716 = vpack.c.b16 %v687, %v686
        %v717 = vpack.c.b16 %v689, %v688
        %v718 = vpack.c.b16 %v691, %v690
        %v719 = vpack.c.b16 %v693, %v692
        %v720 = vpack.c.b16 %v695, %v694
        %v721 = vpack.c.b16 %v697, %v696
        %v722 = vpack.c.b16 %v699, %v698
        %v723 = vpack.c.b16 %v701, %v700
        %v724 = vpack.c.b16 %v703, %v702
        %v725 = vpack.c.b16 %v705, %v704
        %v726 = vpack.c.b16 %v707, %v706
        %v727 = vpack.c.b16 %v709, %v708
        %v728 = vpack.c.b16 %v711, %v710
        %v729 = vpack.c.b16 %v713, %v712
        %vm730 = vcmask 31744
        %v732 = vsel %vm730, %v714, 0
        %v735 = vsel %vm730, %v715, 0
        %v738 = vsel %vm730, %v716, 0
        %v741 = vsel %vm730, %v717, 0
        %v744 = vsel %vm730, %v718, 0
        %v747 = vsel %vm730, %v719, 0
        %v750 = vsel %vm730, %v720, 0
        %v753 = vsel %vm730, %v721, 0
        %v756 = vsel %vm730, %v722, 0
        %v759 = vsel %vm730, %v723, 0
        %v762 = vsel %vm730, %v724, 0
        %v765 = vsel %vm730, %v725, 0
        %v768 = vsel %vm730, %v726, 0
        %v771 = vsel %vm730, %v727, 0
        %v774 = vsel %vm730, %v728, 0
        %v777 = vsel %vm730, %v729, 0
        %vm779 = vcmask 1041408
        %v781 = vsel %vm779, %v642, 0
        %783 = vmatpush.bf16.msra.mxu0 0
        %784 = vmatpush.bf16.msra.mxu0 0
        %785 = vmatpush.bf16.msra.mxu0 0
        %786 = vmatpush.bf16.msra.mxu0 0
        %787 = vmatpush.bf16.msra.mxu0 0
        %788 = vmatpush.bf16.msra.mxu0 0
        %789 = vmatpush.bf16.msra.mxu0 0
        %790 = vmatpush.bf16.msra.mxu0 %v781
        %791 = vmatmul.bf16.gmra.mxu0 %v732
        %v792 = vpop.f32.mrf.mxu0
        %v793 = vadd.f32 %v648, %v792
        %v794 = vpop.f32.mrf.mxu0
        %v795 = vadd.f32 %v648, %v794
        %796 = vmatmul.bf16.gmra.mxu0 %v735
        %v797 = vpop.f32.mrf.mxu0
        %v798 = vadd.f32 %v648, %v797
        %v799 = vpop.f32.mrf.mxu0
        %v800 = vadd.f32 %v648, %v799
        %801 = vmatmul.bf16.gmra.mxu0 %v738
        %v802 = vpop.f32.mrf.mxu0
        %v803 = vadd.f32 %v648, %v802
        %v804 = vpop.f32.mrf.mxu0
        %v805 = vadd.f32 %v648, %v804
        %806 = vmatmul.bf16.gmra.mxu0 %v741
        %v807 = vpop.f32.mrf.mxu0
        %v808 = vadd.f32 %v648, %v807
        %v809 = vpop.f32.mrf.mxu0
        %v810 = vadd.f32 %v648, %v809
        %811 = vmatmul.bf16.gmra.mxu0 %v744
        %v812 = vpop.f32.mrf.mxu0
        %v813 = vadd.f32 %v648, %v812
        %v814 = vpop.f32.mrf.mxu0
        %v815 = vadd.f32 %v648, %v814
        %816 = vmatmul.bf16.gmra.mxu0 %v747
        %v817 = vpop.f32.mrf.mxu0
        %v818 = vadd.f32 %v648, %v817
        %v819 = vpop.f32.mrf.mxu0
        %v820 = vadd.f32 %v648, %v819
        %821 = vmatmul.bf16.gmra.mxu0 %v750
        %v822 = vpop.f32.mrf.mxu0
        %v823 = vadd.f32 %v648, %v822
        %v824 = vpop.f32.mrf.mxu0
        %v825 = vadd.f32 %v648, %v824
        %826 = vmatmul.bf16.gmra.mxu0 %v753
        %v827 = vpop.f32.mrf.mxu0
        %v828 = vadd.f32 %v648, %v827
        %v829 = vpop.f32.mrf.mxu0
        %v830 = vadd.f32 %v648, %v829
        %831 = vmatmul.bf16.gmra.mxu0 %v756
        %v832 = vpop.f32.mrf.mxu0
        %v833 = vadd.f32 %v648, %v832
        %v834 = vpop.f32.mrf.mxu0
        %v835 = vadd.f32 %v648, %v834
        %836 = vmatmul.bf16.gmra.mxu0 %v759
        %v837 = vpop.f32.mrf.mxu0
        %v838 = vadd.f32 %v648, %v837
        %v839 = vpop.f32.mrf.mxu0
        %v840 = vadd.f32 %v648, %v839
        %841 = vmatmul.bf16.gmra.mxu0 %v762
        %v842 = vpop.f32.mrf.mxu0
        %v843 = vadd.f32 %v648, %v842
        %v844 = vpop.f32.mrf.mxu0
        %v845 = vadd.f32 %v648, %v844
        %846 = vmatmul.bf16.gmra.mxu0 %v765
        %v847 = vpop.f32.mrf.mxu0
        %v848 = vadd.f32 %v648, %v847
        %v849 = vpop.f32.mrf.mxu0
        %v850 = vadd.f32 %v648, %v849
        %851 = vmatmul.bf16.gmra.mxu0 %v768
        %v852 = vpop.f32.mrf.mxu0
        %v853 = vadd.f32 %v648, %v852
        %v854 = vpop.f32.mrf.mxu0
        %v855 = vadd.f32 %v648, %v854
        %856 = vmatmul.bf16.gmra.mxu0 %v771
        %v857 = vpop.f32.mrf.mxu0
        %v858 = vadd.f32 %v648, %v857
        %v859 = vpop.f32.mrf.mxu0
        %v860 = vadd.f32 %v648, %v859
        %861 = vmatmul.bf16.gmra.mxu0 %v774
        %v862 = vpop.f32.mrf.mxu0
        %v863 = vadd.f32 %v648, %v862
        %v864 = vpop.f32.mrf.mxu0
        %v865 = vadd.f32 %v648, %v864
        %866 = vmatmul.bf16.gmra.mxu0 %v777
        %v867 = vpop.f32.mrf.mxu0
        %v868 = vadd.f32 %v648, %v867
        %v869 = vpop.f32.mrf.mxu0
        %v870 = vadd.f32 %v648, %v869
        %871 = vdwg.mxu0
        %v872 = vmax.f32 %v793, 0.0
        %v873 = vmax.f32 %v795, 0.0
        %v874 = vmax.f32 %v798, 0.0
        %v875 = vmax.f32 %v800, 0.0
        %v876 = vmax.f32 %v803, 0.0
        %v877 = vmax.f32 %v805, 0.0
        %v878 = vmax.f32 %v808, 0.0
        %v879 = vmax.f32 %v810, 0.0
        %v880 = vmax.f32 %v813, 0.0
        %v881 = vmax.f32 %v815, 0.0
        %v882 = vmax.f32 %v818, 0.0
        %v883 = vmax.f32 %v820, 0.0
        %v884 = vmax.f32 %v823, 0.0
        %v885 = vmax.f32 %v825, 0.0
        %v886 = vmax.f32 %v828, 0.0
        %v887 = vmax.f32 %v830, 0.0
        %v888 = vmax.f32 %v833, 0.0
        %v889 = vmax.f32 %v835, 0.0
        %v890 = vmax.f32 %v838, 0.0
        %v891 = vmax.f32 %v840, 0.0
        %v892 = vmax.f32 %v843, 0.0
        %v893 = vmax.f32 %v845, 0.0
        %v894 = vmax.f32 %v848, 0.0
        %v895 = vmax.f32 %v850, 0.0
        %v896 = vmax.f32 %v853, 0.0
        %v897 = vmax.f32 %v855, 0.0
        %v898 = vmax.f32 %v858, 0.0
        %v899 = vmax.f32 %v860, 0.0
        %v900 = vmax.f32 %v863, 0.0
        %v901 = vmax.f32 %v865, 0.0
        %v902 = vmax.f32 %v868, 0.0
        %v903 = vmax.f32 %v870, 0.0
        %v904 = vpack.c.bf16 %v873, %v872
        %v905 = vpack.c.bf16 %v875, %v874
        %v906 = vpack.c.bf16 %v877, %v876
        %v907 = vpack.c.bf16 %v879, %v878
        %v908 = vpack.c.bf16 %v881, %v880
        %v909 = vpack.c.bf16 %v883, %v882
        %v910 = vpack.c.bf16 %v885, %v884
        %v911 = vpack.c.bf16 %v887, %v886
        %v912 = vpack.c.bf16 %v889, %v888
        %v913 = vpack.c.bf16 %v891, %v890
        %v914 = vpack.c.bf16 %v893, %v892
        %v915 = vpack.c.bf16 %v895, %v894
        %v916 = vpack.c.bf16 %v897, %v896
        %v917 = vpack.c.bf16 %v899, %v898
        %v918 = vpack.c.bf16 %v901, %v900
        %v919 = vpack.c.bf16 %v903, %v902
        %v921 = vperm.slane %v645, 0
        %v924 = vsel %vm779, %v644, 0
        %926 = vmatpush.bf16.msra.mxu0 0
        %927 = vmatpush.bf16.msra.mxu0 0
        %928 = vmatpush.bf16.msra.mxu0 0
        %929 = vmatpush.bf16.msra.mxu0 0
        %930 = vmatpush.bf16.msra.mxu0 0
        %931 = vmatpush.bf16.msra.mxu0 0
        %932 = vmatpush.bf16.msra.mxu0 0
        %933 = vmatpush.bf16.msra.mxu0 %v924
        %934 = vmatmul.bf16.gmra.mxu0 %v732
        %v935 = vpop.f32.mrf.mxu0
        %v936 = vadd.f32 %v921, %v935
        %v937 = vpop.f32.mrf.mxu0
        %v938 = vadd.f32 %v921, %v937
        %939 = vmatmul.bf16.gmra.mxu0 %v735
        %v940 = vpop.f32.mrf.mxu0
        %v941 = vadd.f32 %v921, %v940
        %v942 = vpop.f32.mrf.mxu0
        %v943 = vadd.f32 %v921, %v942
        %944 = vmatmul.bf16.gmra.mxu0 %v738
        %v945 = vpop.f32.mrf.mxu0
        %v946 = vadd.f32 %v921, %v945
        %v947 = vpop.f32.mrf.mxu0
        %v948 = vadd.f32 %v921, %v947
        %949 = vmatmul.bf16.gmra.mxu0 %v741
        %v950 = vpop.f32.mrf.mxu0
        %v951 = vadd.f32 %v921, %v950
        %v952 = vpop.f32.mrf.mxu0
        %v953 = vadd.f32 %v921, %v952
        %954 = vmatmul.bf16.gmra.mxu0 %v744
        %v955 = vpop.f32.mrf.mxu0
        %v956 = vadd.f32 %v921, %v955
        %v957 = vpop.f32.mrf.mxu0
        %v958 = vadd.f32 %v921, %v957
        %959 = vmatmul.bf16.gmra.mxu0 %v747
        %v960 = vpop.f32.mrf.mxu0
        %v961 = vadd.f32 %v921, %v960
        %v962 = vpop.f32.mrf.mxu0
        %v963 = vadd.f32 %v921, %v962
        %964 = vmatmul.bf16.gmra.mxu0 %v750
        %v965 = vpop.f32.mrf.mxu0
        %v966 = vadd.f32 %v921, %v965
        %v967 = vpop.f32.mrf.mxu0
        %v968 = vadd.f32 %v921, %v967
        %969 = vmatmul.bf16.gmra.mxu0 %v753
        %v970 = vpop.f32.mrf.mxu0
        %v971 = vadd.f32 %v921, %v970
        %v972 = vpop.f32.mrf.mxu0
        %v973 = vadd.f32 %v921, %v972
        %974 = vmatmul.bf16.gmra.mxu0 %v756
        %v975 = vpop.f32.mrf.mxu0
        %v976 = vadd.f32 %v921, %v975
        %v977 = vpop.f32.mrf.mxu0
        %v978 = vadd.f32 %v921, %v977
        %979 = vmatmul.bf16.gmra.mxu0 %v759
        %v980 = vpop.f32.mrf.mxu0
        %v981 = vadd.f32 %v921, %v980
        %v982 = vpop.f32.mrf.mxu0
        %v983 = vadd.f32 %v921, %v982
        %984 = vmatmul.bf16.gmra.mxu0 %v762
        %v985 = vpop.f32.mrf.mxu0
        %v986 = vadd.f32 %v921, %v985
        %v987 = vpop.f32.mrf.mxu0
        %v988 = vadd.f32 %v921, %v987
        %989 = vmatmul.bf16.gmra.mxu0 %v765
        %v990 = vpop.f32.mrf.mxu0
        %v991 = vadd.f32 %v921, %v990
        %v992 = vpop.f32.mrf.mxu0
        %v993 = vadd.f32 %v921, %v992
        %994 = vmatmul.bf16.gmra.mxu0 %v768
        %v995 = vpop.f32.mrf.mxu0
        %v996 = vadd.f32 %v921, %v995
        %v997 = vpop.f32.mrf.mxu0
        %v998 = vadd.f32 %v921, %v997
        %999 = vmatmul.bf16.gmra.mxu0 %v771
        %v1000 = vpop.f32.mrf.mxu0
        %v1001 = vadd.f32 %v921, %v1000
        %v1002 = vpop.f32.mrf.mxu0
        %v1003 = vadd.f32 %v921, %v1002
        %1004 = vmatmul.bf16.gmra.mxu0 %v774
        %v1005 = vpop.f32.mrf.mxu0
        %v1006 = vadd.f32 %v921, %v1005
        %v1007 = vpop.f32.mrf.mxu0
        %v1008 = vadd.f32 %v921, %v1007
        %1009 = vmatmul.bf16.gmra.mxu0 %v777
        %v1010 = vpop.f32.mrf.mxu0
        %v1011 = vadd.f32 %v921, %v1010
        %v1012 = vpop.f32.mrf.mxu0
        %v1013 = vadd.f32 %v921, %v1012
        %1014 = vdwg.mxu0
        %v1015 = vmax.f32 %v936, 0.0
        %v1016 = vmax.f32 %v938, 0.0
        %v1017 = vmax.f32 %v941, 0.0
        %v1018 = vmax.f32 %v943, 0.0
        %v1019 = vmax.f32 %v946, 0.0
        %v1020 = vmax.f32 %v948, 0.0
        %v1021 = vmax.f32 %v951, 0.0
        %v1022 = vmax.f32 %v953, 0.0
        %v1023 = vmax.f32 %v956, 0.0
        %v1024 = vmax.f32 %v958, 0.0
        %v1025 = vmax.f32 %v961, 0.0
        %v1026 = vmax.f32 %v963, 0.0
        %v1027 = vmax.f32 %v966, 0.0
        %v1028 = vmax.f32 %v968, 0.0
        %v1029 = vmax.f32 %v971, 0.0
        %v1030 = vmax.f32 %v973, 0.0
        %v1031 = vmax.f32 %v976, 0.0
        %v1032 = vmax.f32 %v978, 0.0
        %v1033 = vmax.f32 %v981, 0.0
        %v1034 = vmax.f32 %v983, 0.0
        %v1035 = vmax.f32 %v986, 0.0
        %v1036 = vmax.f32 %v988, 0.0
        %v1037 = vmax.f32 %v991, 0.0
        %v1038 = vmax.f32 %v993, 0.0
        %v1039 = vmax.f32 %v996, 0.0
        %v1040 = vmax.f32 %v998, 0.0
        %v1041 = vmax.f32 %v1001, 0.0
        %v1042 = vmax.f32 %v1003, 0.0
        %v1043 = vmax.f32 %v1006, 0.0
        %v1044 = vmax.f32 %v1008, 0.0
        %v1045 = vmax.f32 %v1011, 0.0
        %v1046 = vmax.f32 %v1013, 0.0
        %v1047 = vpack.c.bf16 %v1016, %v1015
        %v1048 = vpack.c.bf16 %v1018, %v1017
        %v1049 = vpack.c.bf16 %v1020, %v1019
        %v1050 = vpack.c.bf16 %v1022, %v1021
        %v1051 = vpack.c.bf16 %v1024, %v1023
        %v1052 = vpack.c.bf16 %v1026, %v1025
        %v1053 = vpack.c.bf16 %v1028, %v1027
        %v1054 = vpack.c.bf16 %v1030, %v1029
        %v1055 = vpack.c.bf16 %v1032, %v1031
        %v1056 = vpack.c.bf16 %v1034, %v1033
        %v1057 = vpack.c.bf16 %v1036, %v1035
        %v1058 = vpack.c.bf16 %v1038, %v1037
        %v1059 = vpack.c.bf16 %v1040, %v1039
        %v1060 = vpack.c.bf16 %v1042, %v1041
        %v1061 = vpack.c.bf16 %v1044, %v1043
        %v1062 = vpack.c.bf16 %v1046, %v1045
        %v1063 = vpack.c.bf16 %v938, %v936
        %v1064 = vpack.c.bf16 %v943, %v941
        %v1065 = vpack.c.bf16 %v948, %v946
        %v1066 = vpack.c.bf16 %v953, %v951
        %v1067 = vpack.c.bf16 %v958, %v956
        %v1068 = vpack.c.bf16 %v963, %v961
        %v1069 = vpack.c.bf16 %v968, %v966
        %v1070 = vpack.c.bf16 %v973, %v971
        %v1071 = vpack.c.bf16 %v978, %v976
        %v1072 = vpack.c.bf16 %v983, %v981
        %v1073 = vpack.c.bf16 %v988, %v986
        %v1074 = vpack.c.bf16 %v993, %v991
        %v1075 = vpack.c.bf16 %v998, %v996
        %v1076 = vpack.c.bf16 %v1003, %v1001
        %v1077 = vpack.c.bf16 %v1008, %v1006
        %v1078 = vpack.c.bf16 %v1013, %v1011
        %vm1079 = vcmask 64512
        %v1081 = vsel %vm1079, %v1063, 0
        %v1084 = vsel %vm1079, %v1064, 0
        %v1087 = vsel %vm1079, %v1065, 0
        %v1090 = vsel %vm1079, %v1066, 0
        %v1093 = vsel %vm1079, %v1067, 0
        %v1096 = vsel %vm1079, %v1068, 0
        %v1099 = vsel %vm1079, %v1069, 0
        %v1102 = vsel %vm1079, %v1070, 0
        %v1105 = vsel %vm1079, %v1071, 0
        %v1108 = vsel %vm1079, %v1072, 0
        %v1111 = vsel %vm1079, %v1073, 0
        %v1114 = vsel %vm1079, %v1074, 0
        %v1117 = vsel %vm1079, %v1075, 0
        %v1120 = vsel %vm1079, %v1076, 0
        %v1123 = vsel %vm1079, %v1077, 0
        %v1126 = vsel %vm1079, %v1078, 0
        %vm1128 = vcmask 1043456
        %v1130 = vsel %vm1128, %v646, 0
        %1132 = vmatpush.bf16.msra.mxu0 0
        %1133 = vmatpush.bf16.msra.mxu0 0
        %1134 = vmatpush.bf16.msra.mxu0 0
        %1135 = vmatpush.bf16.msra.mxu0 0
        %1136 = vmatpush.bf16.msra.mxu0 0
        %1137 = vmatpush.bf16.msra.mxu0 0
        %1138 = vmatpush.bf16.msra.mxu0 0
        %1139 = vmatpush.bf16.msra.mxu0 %v1130
        %1140 = vmatmul.bf16.gmra.mxu0 %v1081
        %v1141 = vpop.f32.mrf.mxu0
        %v1142 = vadd.f32 0.0, %v1141
        %v1143 = vpop.f32.mrf.mxu0
        %v1144 = vadd.f32 0.0, %v1143
        %1145 = vmatmul.bf16.gmra.mxu0 %v1084
        %v1146 = vpop.f32.mrf.mxu0
        %v1147 = vadd.f32 0.0, %v1146
        %v1148 = vpop.f32.mrf.mxu0
        %v1149 = vadd.f32 0.0, %v1148
        %1150 = vmatmul.bf16.gmra.mxu0 %v1087
        %v1151 = vpop.f32.mrf.mxu0
        %v1152 = vadd.f32 0.0, %v1151
        %v1153 = vpop.f32.mrf.mxu0
        %v1154 = vadd.f32 0.0, %v1153
        %1155 = vmatmul.bf16.gmra.mxu0 %v1090
        %v1156 = vpop.f32.mrf.mxu0
        %v1157 = vadd.f32 0.0, %v1156
        %v1158 = vpop.f32.mrf.mxu0
        %v1159 = vadd.f32 0.0, %v1158
        %1160 = vmatmul.bf16.gmra.mxu0 %v1093
        %v1161 = vpop.f32.mrf.mxu0
        %v1162 = vadd.f32 0.0, %v1161
        %v1163 = vpop.f32.mrf.mxu0
        %v1164 = vadd.f32 0.0, %v1163
        %1165 = vmatmul.bf16.gmra.mxu0 %v1096
        %v1166 = vpop.f32.mrf.mxu0
        %v1167 = vadd.f32 0.0, %v1166
        %v1168 = vpop.f32.mrf.mxu0
        %v1169 = vadd.f32 0.0, %v1168
        %1170 = vmatmul.bf16.gmra.mxu0 %v1099
        %v1171 = vpop.f32.mrf.mxu0
        %v1172 = vadd.f32 0.0, %v1171
        %v1173 = vpop.f32.mrf.mxu0
        %v1174 = vadd.f32 0.0, %v1173
        %1175 = vmatmul.bf16.gmra.mxu0 %v1102
        %v1176 = vpop.f32.mrf.mxu0
        %v1177 = vadd.f32 0.0, %v1176
        %v1178 = vpop.f32.mrf.mxu0
        %v1179 = vadd.f32 0.0, %v1178
        %1180 = vmatmul.bf16.gmra.mxu0 %v1105
        %v1181 = vpop.f32.mrf.mxu0
        %v1182 = vadd.f32 0.0, %v1181
        %v1183 = vpop.f32.mrf.mxu0
        %v1184 = vadd.f32 0.0, %v1183
        %1185 = vmatmul.bf16.gmra.mxu0 %v1108
        %v1186 = vpop.f32.mrf.mxu0
        %v1187 = vadd.f32 0.0, %v1186
        %v1188 = vpop.f32.mrf.mxu0
        %v1189 = vadd.f32 0.0, %v1188
        %1190 = vmatmul.bf16.gmra.mxu0 %v1111
        %v1191 = vpop.f32.mrf.mxu0
        %v1192 = vadd.f32 0.0, %v1191
        %v1193 = vpop.f32.mrf.mxu0
        %v1194 = vadd.f32 0.0, %v1193
        %1195 = vmatmul.bf16.gmra.mxu0 %v1114
        %v1196 = vpop.f32.mrf.mxu0
        %v1197 = vadd.f32 0.0, %v1196
        %v1198 = vpop.f32.mrf.mxu0
        %v1199 = vadd.f32 0.0, %v1198
        %1200 = vmatmul.bf16.gmra.mxu0 %v1117
        %v1201 = vpop.f32.mrf.mxu0
        %v1202 = vadd.f32 0.0, %v1201
        %v1203 = vpop.f32.mrf.mxu0
        %v1204 = vadd.f32 0.0, %v1203
        %1205 = vmatmul.bf16.gmra.mxu0 %v1120
        %v1206 = vpop.f32.mrf.mxu0
        %v1207 = vadd.f32 0.0, %v1206
        %v1208 = vpop.f32.mrf.mxu0
        %v1209 = vadd.f32 0.0, %v1208
        %1210 = vmatmul.bf16.gmra.mxu0 %v1123
        %v1211 = vpop.f32.mrf.mxu0
        %v1212 = vadd.f32 0.0, %v1211
        %v1213 = vpop.f32.mrf.mxu0
        %v1214 = vadd.f32 0.0, %v1213
        %1215 = vmatmul.bf16.gmra.mxu0 %v1126
        %v1216 = vpop.f32.mrf.mxu0
        %v1217 = vadd.f32 0.0, %v1216
        %v1218 = vpop.f32.mrf.mxu0
        %v1219 = vadd.f32 0.0, %v1218
        %1220 = vdwg.mxu0
        %v1221 = vsub.f32 %v1142, %v793
        %v1222 = vsub.f32 %v1144, %v795
        %v1223 = vsub.f32 %v1147, %v798
        %v1224 = vsub.f32 %v1149, %v800
        %v1225 = vsub.f32 %v1152, %v803
        %v1226 = vsub.f32 %v1154, %v805
        %v1227 = vsub.f32 %v1157, %v808
        %v1228 = vsub.f32 %v1159, %v810
        %v1229 = vsub.f32 %v1162, %v813
        %v1230 = vsub.f32 %v1164, %v815
        %v1231 = vsub.f32 %v1167, %v818
        %v1232 = vsub.f32 %v1169, %v820
        %v1233 = vsub.f32 %v1172, %v823
        %v1234 = vsub.f32 %v1174, %v825
        %v1235 = vsub.f32 %v1177, %v828
        %v1236 = vsub.f32 %v1179, %v830
        %v1237 = vsub.f32 %v1182, %v833
        %v1238 = vsub.f32 %v1184, %v835
        %v1239 = vsub.f32 %v1187, %v838
        %v1240 = vsub.f32 %v1189, %v840
        %v1241 = vsub.f32 %v1192, %v843
        %v1242 = vsub.f32 %v1194, %v845
        %v1243 = vsub.f32 %v1197, %v848
        %v1244 = vsub.f32 %v1199, %v850
        %v1245 = vsub.f32 %v1202, %v853
        %v1246 = vsub.f32 %v1204, %v855
        %v1247 = vsub.f32 %v1207, %v858
        %v1248 = vsub.f32 %v1209, %v860
        %v1249 = vsub.f32 %v1212, %v863
        %v1250 = vsub.f32 %v1214, %v865
        %v1251 = vsub.f32 %v1217, %v868
        %v1252 = vsub.f32 %v1219, %v870
        %v1253 = vmul.f32 %v1221, %v1221
        %v1254 = vmul.f32 %v1222, %v1222
        %v1255 = vmul.f32 %v1223, %v1223
        %v1256 = vmul.f32 %v1224, %v1224
        %v1257 = vmul.f32 %v1225, %v1225
        %v1258 = vmul.f32 %v1226, %v1226
        %v1259 = vmul.f32 %v1227, %v1227
        %v1260 = vmul.f32 %v1228, %v1228
        %v1261 = vmul.f32 %v1229, %v1229
        %v1262 = vmul.f32 %v1230, %v1230
        %v1263 = vmul.f32 %v1231, %v1231
        %v1264 = vmul.f32 %v1232, %v1232
        %v1265 = vmul.f32 %v1233, %v1233
        %v1266 = vmul.f32 %v1234, %v1234
        %v1267 = vmul.f32 %v1235, %v1235
        %v1268 = vmul.f32 %v1236, %v1236
        %v1269 = vmul.f32 %v1237, %v1237
        %v1270 = vmul.f32 %v1238, %v1238
        %v1271 = vmul.f32 %v1239, %v1239
        %v1272 = vmul.f32 %v1240, %v1240
        %v1273 = vmul.f32 %v1241, %v1241
        %v1274 = vmul.f32 %v1242, %v1242
        %v1275 = vmul.f32 %v1243, %v1243
        %v1276 = vmul.f32 %v1244, %v1244
        %v1277 = vmul.f32 %v1245, %v1245
        %v1278 = vmul.f32 %v1246, %v1246
        %v1279 = vmul.f32 %v1247, %v1247
        %v1280 = vmul.f32 %v1248, %v1248
        %v1281 = vmul.f32 %v1249, %v1249
        %v1282 = vmul.f32 %v1250, %v1250
        %v1283 = vmul.f32 %v1251, %v1251
        %v1284 = vmul.f32 %v1252, %v1252
        %vm1285 = vcmask 130048
        %v1286 = vsel %vm1285, %v1253, 0.0
        %v1287 = vsel %vm1285, %v1254, 0.0
        %v1288 = vadd.f32 %v1286, %v1287
        %v1289 = vsel %vm1285, %v1255, 0.0
        %v1290 = vadd.f32 %v1288, %v1289
        %v1291 = vsel %vm1285, %v1256, 0.0
        %v1292 = vadd.f32 %v1290, %v1291
        %v1293 = vsel %vm1285, %v1257, 0.0
        %v1294 = vadd.f32 %v1292, %v1293
        %v1295 = vsel %vm1285, %v1258, 0.0
        %v1296 = vadd.f32 %v1294, %v1295
        %v1297 = vsel %vm1285, %v1259, 0.0
        %v1298 = vadd.f32 %v1296, %v1297
        %v1299 = vsel %vm1285, %v1260, 0.0
        %v1300 = vadd.f32 %v1298, %v1299
        %v1301 = vsel %vm1285, %v1261, 0.0
        %v1302 = vadd.f32 %v1300, %v1301
        %v1303 = vsel %vm1285, %v1262, 0.0
        %v1304 = vadd.f32 %v1302, %v1303
        %v1305 = vsel %vm1285, %v1263, 0.0
        %v1306 = vadd.f32 %v1304, %v1305
        %v1307 = vsel %vm1285, %v1264, 0.0
        %v1308 = vadd.f32 %v1306, %v1307
        %v1309 = vsel %vm1285, %v1265, 0.0
        %v1310 = vadd.f32 %v1308, %v1309
        %v1311 = vsel %vm1285, %v1266, 0.0
        %v1312 = vadd.f32 %v1310, %v1311
        %v1313 = vsel %vm1285, %v1267, 0.0
        %v1314 = vadd.f32 %v1312, %v1313
        %v1315 = vsel %vm1285, %v1268, 0.0
        %v1316 = vadd.f32 %v1314, %v1315
        %v1317 = vsel %vm1285, %v1269, 0.0
        %v1318 = vadd.f32 %v1316, %v1317
        %v1319 = vsel %vm1285, %v1270, 0.0
        %v1320 = vadd.f32 %v1318, %v1319
        %v1321 = vsel %vm1285, %v1271, 0.0
        %v1322 = vadd.f32 %v1320, %v1321
        %v1323 = vsel %vm1285, %v1272, 0.0
        %v1324 = vadd.f32 %v1322, %v1323
        %v1325 = vsel %vm1285, %v1273, 0.0
        %v1326 = vadd.f32 %v1324, %v1325
        %v1327 = vsel %vm1285, %v1274, 0.0
        %v1328 = vadd.f32 %v1326, %v1327
        %v1329 = vsel %vm1285, %v1275, 0.0
        %v1330 = vadd.f32 %v1328, %v1329
        %v1331 = vsel %vm1285, %v1276, 0.0
        %v1332 = vadd.f32 %v1330, %v1331
        %v1333 = vsel %vm1285, %v1277, 0.0
        %v1334 = vadd.f32 %v1332, %v1333
        %v1335 = vsel %vm1285, %v1278, 0.0
        %v1336 = vadd.f32 %v1334, %v1335
        %v1337 = vsel %vm1285, %v1279, 0.0
        %v1338 = vadd.f32 %v1336, %v1337
        %v1339 = vsel %vm1285, %v1280, 0.0
        %v1340 = vadd.f32 %v1338, %v1339
        %v1341 = vsel %vm1285, %v1281, 0.0
        %v1342 = vadd.f32 %v1340, %v1341
        %v1343 = vsel %vm1285, %v1282, 0.0
        %v1344 = vadd.f32 %v1342, %v1343
        %v1345 = vsel %vm1285, %v1283, 0.0
        %v1346 = vadd.f32 %v1344, %v1345
        %v1347 = vsel %vm1285, %v1284, 0.0
        %v1348 = vadd.f32 %v1346, %v1347
        %1349 = vadd.xlane.f32.xlu0 %v1348
        %v1350 = vpop.xlane.xlu0 %1349
        %v1351 = vrot.slane %v1350, 4
        %v1352 = vadd.f32 %v1350, %v1351
        %v1353 = vrot.slane %v1352, 2
        %v1354 = vadd.f32 %v1352, %v1353
        %v1355 = vrot.slane %v1354, 1
        %v1356 = vadd.f32 %v1354, %v1355
        %s1357 = vtos %v1356
        %s1358 = smul.f32 %s1357, 0.25
        %s1359 = sadd.f32 %s1358, 0.0
        %v1360 = vld [vmem:[%s3] sm:$0xf]
        %v1361 = vld [vmem:[%s3 + $0x4] sm:$0xf]
        %v1362 = vld [vmem:[%s4] sm:$0x1]
        %v1363 = vld [vmem:[%s9] sm:$0xf]
        %v1364 = vld [vmem:[%s10] sm:$0x1]
        %v1365 = vld [vmem:[%s14] sm:$0xf]
        %v1366 = vld [vmem:[%s14 + $0x4] sm:$0xf]
        %v1368 = vperm.slane %v1362, 0
        %v1372 = vunpack.c.l.b16 %v1360
        %v1373 = vunpack.c.l.b16 %v1361
        %v1374 = vpack.c.b16 %v1373, %v1372
        %v1377 = vsel %vm1285, %v904, 0
        %v1380 = vsel %vm1285, %v905, 0
        %v1383 = vsel %vm1285, %v906, 0
        %v1386 = vsel %vm1285, %v907, 0
        %v1389 = vsel %vm1285, %v908, 0
        %v1392 = vsel %vm1285, %v909, 0
        %v1395 = vsel %vm1285, %v910, 0
        %v1398 = vsel %vm1285, %v911, 0
        %v1401 = vsel %vm1285, %v912, 0
        %v1404 = vsel %vm1285, %v913, 0
        %v1407 = vsel %vm1285, %v914, 0
        %v1410 = vsel %vm1285, %v915, 0
        %v1413 = vsel %vm1285, %v916, 0
        %v1416 = vsel %vm1285, %v917, 0
        %v1419 = vsel %vm1285, %v918, 0
        %v1422 = vsel %vm1285, %v919, 0
        %1424 = vmatpush.bf16.msra.mxu0 0
        %1425 = vmatpush.bf16.msra.mxu0 0
        %1426 = vmatpush.bf16.msra.mxu0 0
        %1427 = vmatpush.bf16.msra.mxu0 0
        %1428 = vmatpush.bf16.msra.mxu0 0
        %1429 = vmatpush.bf16.msra.mxu0 0
        %1430 = vmatpush.bf16.msra.mxu0 0
        %1431 = vmatpush.bf16.msra.mxu0 %v1374
        %1432 = vmatmul.bf16.gmra.mxu0 %v1377
        %v1433 = vpop.f32.mrf.mxu0
        %v1434 = vadd.f32 %v1368, %v1433
        %v1435 = vpop.f32.mrf.mxu0
        %v1436 = vadd.f32 %v1368, %v1435
        %1437 = vmatmul.bf16.gmra.mxu0 %v1380
        %v1438 = vpop.f32.mrf.mxu0
        %v1439 = vadd.f32 %v1368, %v1438
        %v1440 = vpop.f32.mrf.mxu0
        %v1441 = vadd.f32 %v1368, %v1440
        %1442 = vmatmul.bf16.gmra.mxu0 %v1383
        %v1443 = vpop.f32.mrf.mxu0
        %v1444 = vadd.f32 %v1368, %v1443
        %v1445 = vpop.f32.mrf.mxu0
        %v1446 = vadd.f32 %v1368, %v1445
        %1447 = vmatmul.bf16.gmra.mxu0 %v1386
        %v1448 = vpop.f32.mrf.mxu0
        %v1449 = vadd.f32 %v1368, %v1448
        %v1450 = vpop.f32.mrf.mxu0
        %v1451 = vadd.f32 %v1368, %v1450
        %1452 = vmatmul.bf16.gmra.mxu0 %v1389
        %v1453 = vpop.f32.mrf.mxu0
        %v1454 = vadd.f32 %v1368, %v1453
        %v1455 = vpop.f32.mrf.mxu0
        %v1456 = vadd.f32 %v1368, %v1455
        %1457 = vmatmul.bf16.gmra.mxu0 %v1392
        %v1458 = vpop.f32.mrf.mxu0
        %v1459 = vadd.f32 %v1368, %v1458
        %v1460 = vpop.f32.mrf.mxu0
        %v1461 = vadd.f32 %v1368, %v1460
        %1462 = vmatmul.bf16.gmra.mxu0 %v1395
        %v1463 = vpop.f32.mrf.mxu0
        %v1464 = vadd.f32 %v1368, %v1463
        %v1465 = vpop.f32.mrf.mxu0
        %v1466 = vadd.f32 %v1368, %v1465
        %1467 = vmatmul.bf16.gmra.mxu0 %v1398
        %v1468 = vpop.f32.mrf.mxu0
        %v1469 = vadd.f32 %v1368, %v1468
        %v1470 = vpop.f32.mrf.mxu0
        %v1471 = vadd.f32 %v1368, %v1470
        %1472 = vmatmul.bf16.gmra.mxu0 %v1401
        %v1473 = vpop.f32.mrf.mxu0
        %v1474 = vadd.f32 %v1368, %v1473
        %v1475 = vpop.f32.mrf.mxu0
        %v1476 = vadd.f32 %v1368, %v1475
        %1477 = vmatmul.bf16.gmra.mxu0 %v1404
        %v1478 = vpop.f32.mrf.mxu0
        %v1479 = vadd.f32 %v1368, %v1478
        %v1480 = vpop.f32.mrf.mxu0
        %v1481 = vadd.f32 %v1368, %v1480
        %1482 = vmatmul.bf16.gmra.mxu0 %v1407
        %v1483 = vpop.f32.mrf.mxu0
        %v1484 = vadd.f32 %v1368, %v1483
        %v1485 = vpop.f32.mrf.mxu0
        %v1486 = vadd.f32 %v1368, %v1485
        %1487 = vmatmul.bf16.gmra.mxu0 %v1410
        %v1488 = vpop.f32.mrf.mxu0
        %v1489 = vadd.f32 %v1368, %v1488
        %v1490 = vpop.f32.mrf.mxu0
        %v1491 = vadd.f32 %v1368, %v1490
        %1492 = vmatmul.bf16.gmra.mxu0 %v1413
        %v1493 = vpop.f32.mrf.mxu0
        %v1494 = vadd.f32 %v1368, %v1493
        %v1495 = vpop.f32.mrf.mxu0
        %v1496 = vadd.f32 %v1368, %v1495
        %1497 = vmatmul.bf16.gmra.mxu0 %v1416
        %v1498 = vpop.f32.mrf.mxu0
        %v1499 = vadd.f32 %v1368, %v1498
        %v1500 = vpop.f32.mrf.mxu0
        %v1501 = vadd.f32 %v1368, %v1500
        %1502 = vmatmul.bf16.gmra.mxu0 %v1419
        %v1503 = vpop.f32.mrf.mxu0
        %v1504 = vadd.f32 %v1368, %v1503
        %v1505 = vpop.f32.mrf.mxu0
        %v1506 = vadd.f32 %v1368, %v1505
        %1507 = vmatmul.bf16.gmra.mxu0 %v1422
        %v1508 = vpop.f32.mrf.mxu0
        %v1509 = vadd.f32 %v1368, %v1508
        %v1510 = vpop.f32.mrf.mxu0
        %v1511 = vadd.f32 %v1368, %v1510
        %1512 = vdwg.mxu0
        %v1513 = vmax.f32 %v1434, 0.0
        %v1514 = vmax.f32 %v1436, 0.0
        %v1515 = vmax.f32 %v1439, 0.0
        %v1516 = vmax.f32 %v1441, 0.0
        %v1517 = vmax.f32 %v1444, 0.0
        %v1518 = vmax.f32 %v1446, 0.0
        %v1519 = vmax.f32 %v1449, 0.0
        %v1520 = vmax.f32 %v1451, 0.0
        %v1521 = vmax.f32 %v1454, 0.0
        %v1522 = vmax.f32 %v1456, 0.0
        %v1523 = vmax.f32 %v1459, 0.0
        %v1524 = vmax.f32 %v1461, 0.0
        %v1525 = vmax.f32 %v1464, 0.0
        %v1526 = vmax.f32 %v1466, 0.0
        %v1527 = vmax.f32 %v1469, 0.0
        %v1528 = vmax.f32 %v1471, 0.0
        %v1529 = vmax.f32 %v1474, 0.0
        %v1530 = vmax.f32 %v1476, 0.0
        %v1531 = vmax.f32 %v1479, 0.0
        %v1532 = vmax.f32 %v1481, 0.0
        %v1533 = vmax.f32 %v1484, 0.0
        %v1534 = vmax.f32 %v1486, 0.0
        %v1535 = vmax.f32 %v1489, 0.0
        %v1536 = vmax.f32 %v1491, 0.0
        %v1537 = vmax.f32 %v1494, 0.0
        %v1538 = vmax.f32 %v1496, 0.0
        %v1539 = vmax.f32 %v1499, 0.0
        %v1540 = vmax.f32 %v1501, 0.0
        %v1541 = vmax.f32 %v1504, 0.0
        %v1542 = vmax.f32 %v1506, 0.0
        %v1543 = vmax.f32 %v1509, 0.0
        %v1544 = vmax.f32 %v1511, 0.0
        %v1545 = vpack.c.bf16 %v1514, %v1513
        %v1546 = vpack.c.bf16 %v1516, %v1515
        %v1547 = vpack.c.bf16 %v1518, %v1517
        %v1548 = vpack.c.bf16 %v1520, %v1519
        %v1549 = vpack.c.bf16 %v1522, %v1521
        %v1550 = vpack.c.bf16 %v1524, %v1523
        %v1551 = vpack.c.bf16 %v1526, %v1525
        %v1552 = vpack.c.bf16 %v1528, %v1527
        %v1553 = vpack.c.bf16 %v1530, %v1529
        %v1554 = vpack.c.bf16 %v1532, %v1531
        %v1555 = vpack.c.bf16 %v1534, %v1533
        %v1556 = vpack.c.bf16 %v1536, %v1535
        %v1557 = vpack.c.bf16 %v1538, %v1537
        %v1558 = vpack.c.bf16 %v1540, %v1539
        %v1559 = vpack.c.bf16 %v1542, %v1541
        %v1560 = vpack.c.bf16 %v1544, %v1543
        %v1562 = vperm.slane %v1364, 0
        %v1565 = vsel %vm1079, %v1047, 0
        %v1568 = vsel %vm1079, %v1048, 0
        %v1571 = vsel %vm1079, %v1049, 0
        %v1574 = vsel %vm1079, %v1050, 0
        %v1577 = vsel %vm1079, %v1051, 0
        %v1580 = vsel %vm1079, %v1052, 0
        %v1583 = vsel %vm1079, %v1053, 0
        %v1586 = vsel %vm1079, %v1054, 0
        %v1589 = vsel %vm1079, %v1055, 0
        %v1592 = vsel %vm1079, %v1056, 0
        %v1595 = vsel %vm1079, %v1057, 0
        %v1598 = vsel %vm1079, %v1058, 0
        %v1601 = vsel %vm1079, %v1059, 0
        %v1604 = vsel %vm1079, %v1060, 0
        %v1607 = vsel %vm1079, %v1061, 0
        %v1610 = vsel %vm1079, %v1062, 0
        %v1613 = vsel %vm1128, %v1363, 0
        %1615 = vmatpush.bf16.msra.mxu0 0
        %1616 = vmatpush.bf16.msra.mxu0 0
        %1617 = vmatpush.bf16.msra.mxu0 0
        %1618 = vmatpush.bf16.msra.mxu0 0
        %1619 = vmatpush.bf16.msra.mxu0 0
        %1620 = vmatpush.bf16.msra.mxu0 0
        %1621 = vmatpush.bf16.msra.mxu0 0
        %1622 = vmatpush.bf16.msra.mxu0 %v1613
        %1623 = vmatmul.bf16.gmra.mxu0 %v1565
        %v1624 = vpop.f32.mrf.mxu0
        %v1625 = vadd.f32 %v1562, %v1624
        %v1626 = vpop.f32.mrf.mxu0
        %v1627 = vadd.f32 %v1562, %v1626
        %1628 = vmatmul.bf16.gmra.mxu0 %v1568
        %v1629 = vpop.f32.mrf.mxu0
        %v1630 = vadd.f32 %v1562, %v1629
        %v1631 = vpop.f32.mrf.mxu0
        %v1632 = vadd.f32 %v1562, %v1631
        %1633 = vmatmul.bf16.gmra.mxu0 %v1571
        %v1634 = vpop.f32.mrf.mxu0
        %v1635 = vadd.f32 %v1562, %v1634
        %v1636 = vpop.f32.mrf.mxu0
        %v1637 = vadd.f32 %v1562, %v1636
        %1638 = vmatmul.bf16.gmra.mxu0 %v1574
        %v1639 = vpop.f32.mrf.mxu0
        %v1640 = vadd.f32 %v1562, %v1639
        %v1641 = vpop.f32.mrf.mxu0
        %v1642 = vadd.f32 %v1562, %v1641
        %1643 = vmatmul.bf16.gmra.mxu0 %v1577
        %v1644 = vpop.f32.mrf.mxu0
        %v1645 = vadd.f32 %v1562, %v1644
        %v1646 = vpop.f32.mrf.mxu0
        %v1647 = vadd.f32 %v1562, %v1646
        %1648 = vmatmul.bf16.gmra.mxu0 %v1580
        %v1649 = vpop.f32.mrf.mxu0
        %v1650 = vadd.f32 %v1562, %v1649
        %v1651 = vpop.f32.mrf.mxu0
        %v1652 = vadd.f32 %v1562, %v1651
        %1653 = vmatmul.bf16.gmra.mxu0 %v1583
        %v1654 = vpop.f32.mrf.mxu0
        %v1655 = vadd.f32 %v1562, %v1654
        %v1656 = vpop.f32.mrf.mxu0
        %v1657 = vadd.f32 %v1562, %v1656
        %1658 = vmatmul.bf16.gmra.mxu0 %v1586
        %v1659 = vpop.f32.mrf.mxu0
        %v1660 = vadd.f32 %v1562, %v1659
        %v1661 = vpop.f32.mrf.mxu0
        %v1662 = vadd.f32 %v1562, %v1661
        %1663 = vmatmul.bf16.gmra.mxu0 %v1589
        %v1664 = vpop.f32.mrf.mxu0
        %v1665 = vadd.f32 %v1562, %v1664
        %v1666 = vpop.f32.mrf.mxu0
        %v1667 = vadd.f32 %v1562, %v1666
        %1668 = vmatmul.bf16.gmra.mxu0 %v1592
        %v1669 = vpop.f32.mrf.mxu0
        %v1670 = vadd.f32 %v1562, %v1669
        %v1671 = vpop.f32.mrf.mxu0
        %v1672 = vadd.f32 %v1562, %v1671
        %1673 = vmatmul.bf16.gmra.mxu0 %v1595
        %v1674 = vpop.f32.mrf.mxu0
        %v1675 = vadd.f32 %v1562, %v1674
        %v1676 = vpop.f32.mrf.mxu0
        %v1677 = vadd.f32 %v1562, %v1676
        %1678 = vmatmul.bf16.gmra.mxu0 %v1598
        %v1679 = vpop.f32.mrf.mxu0
        %v1680 = vadd.f32 %v1562, %v1679
        %v1681 = vpop.f32.mrf.mxu0
        %v1682 = vadd.f32 %v1562, %v1681
        %1683 = vmatmul.bf16.gmra.mxu0 %v1601
        %v1684 = vpop.f32.mrf.mxu0
        %v1685 = vadd.f32 %v1562, %v1684
        %v1686 = vpop.f32.mrf.mxu0
        %v1687 = vadd.f32 %v1562, %v1686
        %1688 = vmatmul.bf16.gmra.mxu0 %v1604
        %v1689 = vpop.f32.mrf.mxu0
        %v1690 = vadd.f32 %v1562, %v1689
        %v1691 = vpop.f32.mrf.mxu0
        %v1692 = vadd.f32 %v1562, %v1691
        %1693 = vmatmul.bf16.gmra.mxu0 %v1607
        %v1694 = vpop.f32.mrf.mxu0
        %v1695 = vadd.f32 %v1562, %v1694
        %v1696 = vpop.f32.mrf.mxu0
        %v1697 = vadd.f32 %v1562, %v1696
        %1698 = vmatmul.bf16.gmra.mxu0 %v1610
        %v1699 = vpop.f32.mrf.mxu0
        %v1700 = vadd.f32 %v1562, %v1699
        %v1701 = vpop.f32.mrf.mxu0
        %v1702 = vadd.f32 %v1562, %v1701
        %1703 = vdwg.mxu0
        %v1704 = vmax.f32 %v1625, 0.0
        %v1705 = vmax.f32 %v1627, 0.0
        %v1706 = vmax.f32 %v1630, 0.0
        %v1707 = vmax.f32 %v1632, 0.0
        %v1708 = vmax.f32 %v1635, 0.0
        %v1709 = vmax.f32 %v1637, 0.0
        %v1710 = vmax.f32 %v1640, 0.0
        %v1711 = vmax.f32 %v1642, 0.0
        %v1712 = vmax.f32 %v1645, 0.0
        %v1713 = vmax.f32 %v1647, 0.0
        %v1714 = vmax.f32 %v1650, 0.0
        %v1715 = vmax.f32 %v1652, 0.0
        %v1716 = vmax.f32 %v1655, 0.0
        %v1717 = vmax.f32 %v1657, 0.0
        %v1718 = vmax.f32 %v1660, 0.0
        %v1719 = vmax.f32 %v1662, 0.0
        %v1720 = vmax.f32 %v1665, 0.0
        %v1721 = vmax.f32 %v1667, 0.0
        %v1722 = vmax.f32 %v1670, 0.0
        %v1723 = vmax.f32 %v1672, 0.0
        %v1724 = vmax.f32 %v1675, 0.0
        %v1725 = vmax.f32 %v1677, 0.0
        %v1726 = vmax.f32 %v1680, 0.0
        %v1727 = vmax.f32 %v1682, 0.0
        %v1728 = vmax.f32 %v1685, 0.0
        %v1729 = vmax.f32 %v1687, 0.0
        %v1730 = vmax.f32 %v1690, 0.0
        %v1731 = vmax.f32 %v1692, 0.0
        %v1732 = vmax.f32 %v1695, 0.0
        %v1733 = vmax.f32 %v1697, 0.0
        %v1734 = vmax.f32 %v1700, 0.0
        %v1735 = vmax.f32 %v1702, 0.0
        %v1736 = vpack.c.bf16 %v1705, %v1704
        %v1737 = vpack.c.bf16 %v1707, %v1706
        %v1738 = vpack.c.bf16 %v1709, %v1708
        %v1739 = vpack.c.bf16 %v1711, %v1710
        %v1740 = vpack.c.bf16 %v1713, %v1712
        %v1741 = vpack.c.bf16 %v1715, %v1714
        %v1742 = vpack.c.bf16 %v1717, %v1716
        %v1743 = vpack.c.bf16 %v1719, %v1718
        %v1744 = vpack.c.bf16 %v1721, %v1720
        %v1745 = vpack.c.bf16 %v1723, %v1722
        %v1746 = vpack.c.bf16 %v1725, %v1724
        %v1747 = vpack.c.bf16 %v1727, %v1726
        %v1748 = vpack.c.bf16 %v1729, %v1728
        %v1749 = vpack.c.bf16 %v1731, %v1730
        %v1750 = vpack.c.bf16 %v1733, %v1732
        %v1751 = vpack.c.bf16 %v1735, %v1734
        %v1752 = vpack.c.bf16 %v1627, %v1625
        %v1753 = vpack.c.bf16 %v1632, %v1630
        %v1754 = vpack.c.bf16 %v1637, %v1635
        %v1755 = vpack.c.bf16 %v1642, %v1640
        %v1756 = vpack.c.bf16 %v1647, %v1645
        %v1757 = vpack.c.bf16 %v1652, %v1650
        %v1758 = vpack.c.bf16 %v1657, %v1655
        %v1759 = vpack.c.bf16 %v1662, %v1660
        %v1760 = vpack.c.bf16 %v1667, %v1665
        %v1761 = vpack.c.bf16 %v1672, %v1670
        %v1762 = vpack.c.bf16 %v1677, %v1675
        %v1763 = vpack.c.bf16 %v1682, %v1680
        %v1764 = vpack.c.bf16 %v1687, %v1685
        %v1765 = vpack.c.bf16 %v1692, %v1690
        %v1766 = vpack.c.bf16 %v1697, %v1695
        %v1767 = vpack.c.bf16 %v1702, %v1700
        %v1770 = vunpack.c.l.b16 %v1365
        %v1771 = vunpack.c.l.b16 %v1366
        %v1772 = vpack.c.b16 %v1771, %v1770
        %v1775 = vsel %vm1285, %v1752, 0
        %v1778 = vsel %vm1285, %v1753, 0
        %v1781 = vsel %vm1285, %v1754, 0
        %v1784 = vsel %vm1285, %v1755, 0
        %v1787 = vsel %vm1285, %v1756, 0
        %v1790 = vsel %vm1285, %v1757, 0
        %v1793 = vsel %vm1285, %v1758, 0
        %v1796 = vsel %vm1285, %v1759, 0
        %v1799 = vsel %vm1285, %v1760, 0
        %v1802 = vsel %vm1285, %v1761, 0
        %v1805 = vsel %vm1285, %v1762, 0
        %v1808 = vsel %vm1285, %v1763, 0
        %v1811 = vsel %vm1285, %v1764, 0
        %v1814 = vsel %vm1285, %v1765, 0
        %v1817 = vsel %vm1285, %v1766, 0
        %v1820 = vsel %vm1285, %v1767, 0
        %1822 = vmatpush.bf16.msra.mxu0 0
        %1823 = vmatpush.bf16.msra.mxu0 0
        %1824 = vmatpush.bf16.msra.mxu0 0
        %1825 = vmatpush.bf16.msra.mxu0 0
        %1826 = vmatpush.bf16.msra.mxu0 0
        %1827 = vmatpush.bf16.msra.mxu0 0
        %1828 = vmatpush.bf16.msra.mxu0 0
        %1829 = vmatpush.bf16.msra.mxu0 %v1772
        %1830 = vmatmul.bf16.gmra.mxu0 %v1775
        %v1831 = vpop.f32.mrf.mxu0
        %v1832 = vadd.f32 0.0, %v1831
        %v1833 = vpop.f32.mrf.mxu0
        %v1834 = vadd.f32 0.0, %v1833
        %1835 = vmatmul.bf16.gmra.mxu0 %v1778
        %v1836 = vpop.f32.mrf.mxu0
        %v1837 = vadd.f32 0.0, %v1836
        %v1838 = vpop.f32.mrf.mxu0
        %v1839 = vadd.f32 0.0, %v1838
        %1840 = vmatmul.bf16.gmra.mxu0 %v1781
        %v1841 = vpop.f32.mrf.mxu0
        %v1842 = vadd.f32 0.0, %v1841
        %v1843 = vpop.f32.mrf.mxu0
        %v1844 = vadd.f32 0.0, %v1843
        %1845 = vmatmul.bf16.gmra.mxu0 %v1784
        %v1846 = vpop.f32.mrf.mxu0
        %v1847 = vadd.f32 0.0, %v1846
        %v1848 = vpop.f32.mrf.mxu0
        %v1849 = vadd.f32 0.0, %v1848
        %1850 = vmatmul.bf16.gmra.mxu0 %v1787
        %v1851 = vpop.f32.mrf.mxu0
        %v1852 = vadd.f32 0.0, %v1851
        %v1853 = vpop.f32.mrf.mxu0
        %v1854 = vadd.f32 0.0, %v1853
        %1855 = vmatmul.bf16.gmra.mxu0 %v1790
        %v1856 = vpop.f32.mrf.mxu0
        %v1857 = vadd.f32 0.0, %v1856
        %v1858 = vpop.f32.mrf.mxu0
        %v1859 = vadd.f32 0.0, %v1858
        %1860 = vmatmul.bf16.gmra.mxu0 %v1793
        %v1861 = vpop.f32.mrf.mxu0
        %v1862 = vadd.f32 0.0, %v1861
        %v1863 = vpop.f32.mrf.mxu0
        %v1864 = vadd.f32 0.0, %v1863
        %1865 = vmatmul.bf16.gmra.mxu0 %v1796
        %v1866 = vpop.f32.mrf.mxu0
        %v1867 = vadd.f32 0.0, %v1866
        %v1868 = vpop.f32.mrf.mxu0
        %v1869 = vadd.f32 0.0, %v1868
        %1870 = vmatmul.bf16.gmra.mxu0 %v1799
        %v1871 = vpop.f32.mrf.mxu0
        %v1872 = vadd.f32 0.0, %v1871
        %v1873 = vpop.f32.mrf.mxu0
        %v1874 = vadd.f32 0.0, %v1873
        %1875 = vmatmul.bf16.gmra.mxu0 %v1802
        %v1876 = vpop.f32.mrf.mxu0
        %v1877 = vadd.f32 0.0, %v1876
        %v1878 = vpop.f32.mrf.mxu0
        %v1879 = vadd.f32 0.0, %v1878
        %1880 = vmatmul.bf16.gmra.mxu0 %v1805
        %v1881 = vpop.f32.mrf.mxu0
        %v1882 = vadd.f32 0.0, %v1881
        %v1883 = vpop.f32.mrf.mxu0
        %v1884 = vadd.f32 0.0, %v1883
        %1885 = vmatmul.bf16.gmra.mxu0 %v1808
        %v1886 = vpop.f32.mrf.mxu0
        %v1887 = vadd.f32 0.0, %v1886
        %v1888 = vpop.f32.mrf.mxu0
        %v1889 = vadd.f32 0.0, %v1888
        %1890 = vmatmul.bf16.gmra.mxu0 %v1811
        %v1891 = vpop.f32.mrf.mxu0
        %v1892 = vadd.f32 0.0, %v1891
        %v1893 = vpop.f32.mrf.mxu0
        %v1894 = vadd.f32 0.0, %v1893
        %1895 = vmatmul.bf16.gmra.mxu0 %v1814
        %v1896 = vpop.f32.mrf.mxu0
        %v1897 = vadd.f32 0.0, %v1896
        %v1898 = vpop.f32.mrf.mxu0
        %v1899 = vadd.f32 0.0, %v1898
        %1900 = vmatmul.bf16.gmra.mxu0 %v1817
        %v1901 = vpop.f32.mrf.mxu0
        %v1902 = vadd.f32 0.0, %v1901
        %v1903 = vpop.f32.mrf.mxu0
        %v1904 = vadd.f32 0.0, %v1903
        %1905 = vmatmul.bf16.gmra.mxu0 %v1820
        %v1906 = vpop.f32.mrf.mxu0
        %v1907 = vadd.f32 0.0, %v1906
        %v1908 = vpop.f32.mrf.mxu0
        %v1909 = vadd.f32 0.0, %v1908
        %1910 = vdwg.mxu0
        %v1911 = vsub.f32 %v1832, %v1434
        %v1912 = vsub.f32 %v1834, %v1436
        %v1913 = vsub.f32 %v1837, %v1439
        %v1914 = vsub.f32 %v1839, %v1441
        %v1915 = vsub.f32 %v1842, %v1444
        %v1916 = vsub.f32 %v1844, %v1446
        %v1917 = vsub.f32 %v1847, %v1449
        %v1918 = vsub.f32 %v1849, %v1451
        %v1919 = vsub.f32 %v1852, %v1454
        %v1920 = vsub.f32 %v1854, %v1456
        %v1921 = vsub.f32 %v1857, %v1459
        %v1922 = vsub.f32 %v1859, %v1461
        %v1923 = vsub.f32 %v1862, %v1464
        %v1924 = vsub.f32 %v1864, %v1466
        %v1925 = vsub.f32 %v1867, %v1469
        %v1926 = vsub.f32 %v1869, %v1471
        %v1927 = vsub.f32 %v1872, %v1474
        %v1928 = vsub.f32 %v1874, %v1476
        %v1929 = vsub.f32 %v1877, %v1479
        %v1930 = vsub.f32 %v1879, %v1481
        %v1931 = vsub.f32 %v1882, %v1484
        %v1932 = vsub.f32 %v1884, %v1486
        %v1933 = vsub.f32 %v1887, %v1489
        %v1934 = vsub.f32 %v1889, %v1491
        %v1935 = vsub.f32 %v1892, %v1494
        %v1936 = vsub.f32 %v1894, %v1496
        %v1937 = vsub.f32 %v1897, %v1499
        %v1938 = vsub.f32 %v1899, %v1501
        %v1939 = vsub.f32 %v1902, %v1504
        %v1940 = vsub.f32 %v1904, %v1506
        %v1941 = vsub.f32 %v1907, %v1509
        %v1942 = vsub.f32 %v1909, %v1511
        %v1943 = vmul.f32 %v1911, %v1911
        %v1944 = vmul.f32 %v1912, %v1912
        %v1945 = vmul.f32 %v1913, %v1913
        %v1946 = vmul.f32 %v1914, %v1914
        %v1947 = vmul.f32 %v1915, %v1915
        %v1948 = vmul.f32 %v1916, %v1916
        %v1949 = vmul.f32 %v1917, %v1917
        %v1950 = vmul.f32 %v1918, %v1918
        %v1951 = vmul.f32 %v1919, %v1919
        %v1952 = vmul.f32 %v1920, %v1920
        %v1953 = vmul.f32 %v1921, %v1921
        %v1954 = vmul.f32 %v1922, %v1922
        %v1955 = vmul.f32 %v1923, %v1923
        %v1956 = vmul.f32 %v1924, %v1924
        %v1957 = vmul.f32 %v1925, %v1925
        %v1958 = vmul.f32 %v1926, %v1926
        %v1959 = vmul.f32 %v1927, %v1927
        %v1960 = vmul.f32 %v1928, %v1928
        %v1961 = vmul.f32 %v1929, %v1929
        %v1962 = vmul.f32 %v1930, %v1930
        %v1963 = vmul.f32 %v1931, %v1931
        %v1964 = vmul.f32 %v1932, %v1932
        %v1965 = vmul.f32 %v1933, %v1933
        %v1966 = vmul.f32 %v1934, %v1934
        %v1967 = vmul.f32 %v1935, %v1935
        %v1968 = vmul.f32 %v1936, %v1936
        %v1969 = vmul.f32 %v1937, %v1937
        %v1970 = vmul.f32 %v1938, %v1938
        %v1971 = vmul.f32 %v1939, %v1939
        %v1972 = vmul.f32 %v1940, %v1940
        %v1973 = vmul.f32 %v1941, %v1941
        %v1974 = vmul.f32 %v1942, %v1942
        %vm1975 = vcmask 261120
        %v1976 = vsel %vm1975, %v1943, 0.0
        %v1977 = vsel %vm1975, %v1944, 0.0
        %v1978 = vadd.f32 %v1976, %v1977
        %v1979 = vsel %vm1975, %v1945, 0.0
        %v1980 = vadd.f32 %v1978, %v1979
        %v1981 = vsel %vm1975, %v1946, 0.0
        %v1982 = vadd.f32 %v1980, %v1981
        %v1983 = vsel %vm1975, %v1947, 0.0
        %v1984 = vadd.f32 %v1982, %v1983
        %v1985 = vsel %vm1975, %v1948, 0.0
        %v1986 = vadd.f32 %v1984, %v1985
        %v1987 = vsel %vm1975, %v1949, 0.0
        %v1988 = vadd.f32 %v1986, %v1987
        %v1989 = vsel %vm1975, %v1950, 0.0
        %v1990 = vadd.f32 %v1988, %v1989
        %v1991 = vsel %vm1975, %v1951, 0.0
        %v1992 = vadd.f32 %v1990, %v1991
        %v1993 = vsel %vm1975, %v1952, 0.0
        %v1994 = vadd.f32 %v1992, %v1993
        %v1995 = vsel %vm1975, %v1953, 0.0
        %v1996 = vadd.f32 %v1994, %v1995
        %v1997 = vsel %vm1975, %v1954, 0.0
        %v1998 = vadd.f32 %v1996, %v1997
        %v1999 = vsel %vm1975, %v1955, 0.0
        %v2000 = vadd.f32 %v1998, %v1999
        %v2001 = vsel %vm1975, %v1956, 0.0
        %v2002 = vadd.f32 %v2000, %v2001
        %v2003 = vsel %vm1975, %v1957, 0.0
        %v2004 = vadd.f32 %v2002, %v2003
        %v2005 = vsel %vm1975, %v1958, 0.0
        %v2006 = vadd.f32 %v2004, %v2005
        %v2007 = vsel %vm1975, %v1959, 0.0
        %v2008 = vadd.f32 %v2006, %v2007
        %v2009 = vsel %vm1975, %v1960, 0.0
        %v2010 = vadd.f32 %v2008, %v2009
        %v2011 = vsel %vm1975, %v1961, 0.0
        %v2012 = vadd.f32 %v2010, %v2011
        %v2013 = vsel %vm1975, %v1962, 0.0
        %v2014 = vadd.f32 %v2012, %v2013
        %v2015 = vsel %vm1975, %v1963, 0.0
        %v2016 = vadd.f32 %v2014, %v2015
        %v2017 = vsel %vm1975, %v1964, 0.0
        %v2018 = vadd.f32 %v2016, %v2017
        %v2019 = vsel %vm1975, %v1965, 0.0
        %v2020 = vadd.f32 %v2018, %v2019
        %v2021 = vsel %vm1975, %v1966, 0.0
        %v2022 = vadd.f32 %v2020, %v2021
        %v2023 = vsel %vm1975, %v1967, 0.0
        %v2024 = vadd.f32 %v2022, %v2023
        %v2025 = vsel %vm1975, %v1968, 0.0
        %v2026 = vadd.f32 %v2024, %v2025
        %v2027 = vsel %vm1975, %v1969, 0.0
        %v2028 = vadd.f32 %v2026, %v2027
        %v2029 = vsel %vm1975, %v1970, 0.0
        %v2030 = vadd.f32 %v2028, %v2029
        %v2031 = vsel %vm1975, %v1971, 0.0
        %v2032 = vadd.f32 %v2030, %v2031
        %v2033 = vsel %vm1975, %v1972, 0.0
        %v2034 = vadd.f32 %v2032, %v2033
        %v2035 = vsel %vm1975, %v1973, 0.0
        %v2036 = vadd.f32 %v2034, %v2035
        %v2037 = vsel %vm1975, %v1974, 0.0
        %v2038 = vadd.f32 %v2036, %v2037
        %2039 = vadd.xlane.f32.xlu0 %v2038
        %v2040 = vpop.xlane.xlu0 %2039
        %v2041 = vrot.slane %v2040, 4
        %v2042 = vadd.f32 %v2040, %v2041
        %v2043 = vrot.slane %v2042, 2
        %v2044 = vadd.f32 %v2042, %v2043
        %v2045 = vrot.slane %v2044, 1
        %v2046 = vadd.f32 %v2044, %v2045
        %s2047 = vtos %v2046
        %s2048 = smul.f32 %s2047, 0.5
        %s2049 = sadd.f32 %s1359, %s2048
        %v2050 = vld [vmem:[%s5] sm:$0xf]
        %v2051 = vld [vmem:[%s5 + $0x4] sm:$0xf]
        %v2052 = vld [vmem:[%s5 + $0x8] sm:$0xf]
        %v2053 = vld [vmem:[%s5 + $0xc] sm:$0xf]
        %v2054 = vld [vmem:[%s6] sm:$0x1]
        %v2055 = vld [vmem:[%s11] sm:$0xf]
        %v2056 = vld [vmem:[%s11 + $0x4] sm:$0xf]
        %v2057 = vld [vmem:[%s12] sm:$0x1]
        %v2058 = vld [vmem:[%s15] sm:$0xf]
        %v2059 = vld [vmem:[%s15 + $0x4] sm:$0xf]
        %v2060 = vld [vmem:[%s15 + $0x8] sm:$0xf]
        %v2061 = vld [vmem:[%s15 + $0xc] sm:$0xf]
        %v2063 = vperm.slane %v2054, 0
        %v2069 = vunpack.c.l.b16 %v2050
        %v2070 = vunpack.c.l.b16 %v2051
        %v2071 = vunpack.c.l.b16 %v2052
        %v2072 = vunpack.c.l.b16 %v2053
        %v2073 = vpack.c.b16 %v2070, %v2069
        %v2074 = vpack.c.b16 %v2072, %v2071
        %v2078 = vsel %vm1975, %v1545, 0
        %v2081 = vsel %vm1975, %v1546, 0
        %v2084 = vsel %vm1975, %v1547, 0
        %v2087 = vsel %vm1975, %v1548, 0
        %v2090 = vsel %vm1975, %v1549, 0
        %v2093 = vsel %vm1975, %v1550, 0
        %v2096 = vsel %vm1975, %v1551, 0
        %v2099 = vsel %vm1975, %v1552, 0
        %v2102 = vsel %vm1975, %v1553, 0
        %v2105 = vsel %vm1975, %v1554, 0
        %v2108 = vsel %vm1975, %v1555, 0
        %v2111 = vsel %vm1975, %v1556, 0
        %v2114 = vsel %vm1975, %v1557, 0
        %v2117 = vsel %vm1975, %v1558, 0
        %v2120 = vsel %vm1975, %v1559, 0
        %v2123 = vsel %vm1975, %v1560, 0
        %2125 = vmatpush.bf16.msra.mxu0 0
        %2126 = vmatpush.bf16.msra.mxu0 0
        %2127 = vmatpush.bf16.msra.mxu0 0
        %2128 = vmatpush.bf16.msra.mxu0 0
        %2129 = vmatpush.bf16.msra.mxu0 0
        %2130 = vmatpush.bf16.msra.mxu0 0
        %2131 = vmatpush.bf16.msra.mxu0 %v2074
        %2132 = vmatpush.bf16.msra.mxu0 %v2073
        %2133 = vmatmul.bf16.gmra.mxu0 %v2078
        %v2134 = vpop.f32.mrf.mxu0
        %v2135 = vadd.f32 %v2063, %v2134
        %v2136 = vpop.f32.mrf.mxu0
        %v2137 = vadd.f32 %v2063, %v2136
        %2138 = vmatmul.bf16.gmra.mxu0 %v2081
        %v2139 = vpop.f32.mrf.mxu0
        %v2140 = vadd.f32 %v2063, %v2139
        %v2141 = vpop.f32.mrf.mxu0
        %v2142 = vadd.f32 %v2063, %v2141
        %2143 = vmatmul.bf16.gmra.mxu0 %v2084
        %v2144 = vpop.f32.mrf.mxu0
        %v2145 = vadd.f32 %v2063, %v2144
        %v2146 = vpop.f32.mrf.mxu0
        %v2147 = vadd.f32 %v2063, %v2146
        %2148 = vmatmul.bf16.gmra.mxu0 %v2087
        %v2149 = vpop.f32.mrf.mxu0
        %v2150 = vadd.f32 %v2063, %v2149
        %v2151 = vpop.f32.mrf.mxu0
        %v2152 = vadd.f32 %v2063, %v2151
        %2153 = vmatmul.bf16.gmra.mxu0 %v2090
        %v2154 = vpop.f32.mrf.mxu0
        %v2155 = vadd.f32 %v2063, %v2154
        %v2156 = vpop.f32.mrf.mxu0
        %v2157 = vadd.f32 %v2063, %v2156
        %2158 = vmatmul.bf16.gmra.mxu0 %v2093
        %v2159 = vpop.f32.mrf.mxu0
        %v2160 = vadd.f32 %v2063, %v2159
        %v2161 = vpop.f32.mrf.mxu0
        %v2162 = vadd.f32 %v2063, %v2161
        %2163 = vmatmul.bf16.gmra.mxu0 %v2096
        %v2164 = vpop.f32.mrf.mxu0
        %v2165 = vadd.f32 %v2063, %v2164
        %v2166 = vpop.f32.mrf.mxu0
        %v2167 = vadd.f32 %v2063, %v2166
        %2168 = vmatmul.bf16.gmra.mxu0 %v2099
        %v2169 = vpop.f32.mrf.mxu0
        %v2170 = vadd.f32 %v2063, %v2169
        %v2171 = vpop.f32.mrf.mxu0
        %v2172 = vadd.f32 %v2063, %v2171
        %2173 = vmatmul.bf16.gmra.mxu0 %v2102
        %v2174 = vpop.f32.mrf.mxu0
        %v2175 = vadd.f32 %v2063, %v2174
        %v2176 = vpop.f32.mrf.mxu0
        %v2177 = vadd.f32 %v2063, %v2176
        %2178 = vmatmul.bf16.gmra.mxu0 %v2105
        %v2179 = vpop.f32.mrf.mxu0
        %v2180 = vadd.f32 %v2063, %v2179
        %v2181 = vpop.f32.mrf.mxu0
        %v2182 = vadd.f32 %v2063, %v2181
        %2183 = vmatmul.bf16.gmra.mxu0 %v2108
        %v2184 = vpop.f32.mrf.mxu0
        %v2185 = vadd.f32 %v2063, %v2184
        %v2186 = vpop.f32.mrf.mxu0
        %v2187 = vadd.f32 %v2063, %v2186
        %2188 = vmatmul.bf16.gmra.mxu0 %v2111
        %v2189 = vpop.f32.mrf.mxu0
        %v2190 = vadd.f32 %v2063, %v2189
        %v2191 = vpop.f32.mrf.mxu0
        %v2192 = vadd.f32 %v2063, %v2191
        %2193 = vmatmul.bf16.gmra.mxu0 %v2114
        %v2194 = vpop.f32.mrf.mxu0
        %v2195 = vadd.f32 %v2063, %v2194
        %v2196 = vpop.f32.mrf.mxu0
        %v2197 = vadd.f32 %v2063, %v2196
        %2198 = vmatmul.bf16.gmra.mxu0 %v2117
        %v2199 = vpop.f32.mrf.mxu0
        %v2200 = vadd.f32 %v2063, %v2199
        %v2201 = vpop.f32.mrf.mxu0
        %v2202 = vadd.f32 %v2063, %v2201
        %2203 = vmatmul.bf16.gmra.mxu0 %v2120
        %v2204 = vpop.f32.mrf.mxu0
        %v2205 = vadd.f32 %v2063, %v2204
        %v2206 = vpop.f32.mrf.mxu0
        %v2207 = vadd.f32 %v2063, %v2206
        %2208 = vmatmul.bf16.gmra.mxu0 %v2123
        %v2209 = vpop.f32.mrf.mxu0
        %v2210 = vadd.f32 %v2063, %v2209
        %v2211 = vpop.f32.mrf.mxu0
        %v2212 = vadd.f32 %v2063, %v2211
        %2213 = vdwg.mxu0
        %v2215 = vperm.slane %v2057, 0
        %v2219 = vunpack.c.l.b16 %v2055
        %v2220 = vunpack.c.l.b16 %v2056
        %v2221 = vpack.c.b16 %v2220, %v2219
        %v2224 = vsel %vm1285, %v1736, 0
        %v2227 = vsel %vm1285, %v1737, 0
        %v2230 = vsel %vm1285, %v1738, 0
        %v2233 = vsel %vm1285, %v1739, 0
        %v2236 = vsel %vm1285, %v1740, 0
        %v2239 = vsel %vm1285, %v1741, 0
        %v2242 = vsel %vm1285, %v1742, 0
        %v2245 = vsel %vm1285, %v1743, 0
        %v2248 = vsel %vm1285, %v1744, 0
        %v2251 = vsel %vm1285, %v1745, 0
        %v2254 = vsel %vm1285, %v1746, 0
        %v2257 = vsel %vm1285, %v1747, 0
        %v2260 = vsel %vm1285, %v1748, 0
        %v2263 = vsel %vm1285, %v1749, 0
        %v2266 = vsel %vm1285, %v1750, 0
        %v2269 = vsel %vm1285, %v1751, 0
        %2271 = vmatpush.bf16.msra.mxu0 0
        %2272 = vmatpush.bf16.msra.mxu0 0
        %2273 = vmatpush.bf16.msra.mxu0 0
        %2274 = vmatpush.bf16.msra.mxu0 0
        %2275 = vmatpush.bf16.msra.mxu0 0
        %2276 = vmatpush.bf16.msra.mxu0 0
        %2277 = vmatpush.bf16.msra.mxu0 0
        %2278 = vmatpush.bf16.msra.mxu0 %v2221
        %2279 = vmatmul.bf16.gmra.mxu0 %v2224
        %v2280 = vpop.f32.mrf.mxu0
        %v2281 = vadd.f32 %v2215, %v2280
        %v2282 = vpop.f32.mrf.mxu0
        %v2283 = vadd.f32 %v2215, %v2282
        %2284 = vmatmul.bf16.gmra.mxu0 %v2227
        %v2285 = vpop.f32.mrf.mxu0
        %v2286 = vadd.f32 %v2215, %v2285
        %v2287 = vpop.f32.mrf.mxu0
        %v2288 = vadd.f32 %v2215, %v2287
        %2289 = vmatmul.bf16.gmra.mxu0 %v2230
        %v2290 = vpop.f32.mrf.mxu0
        %v2291 = vadd.f32 %v2215, %v2290
        %v2292 = vpop.f32.mrf.mxu0
        %v2293 = vadd.f32 %v2215, %v2292
        %2294 = vmatmul.bf16.gmra.mxu0 %v2233
        %v2295 = vpop.f32.mrf.mxu0
        %v2296 = vadd.f32 %v2215, %v2295
        %v2297 = vpop.f32.mrf.mxu0
        %v2298 = vadd.f32 %v2215, %v2297
        %2299 = vmatmul.bf16.gmra.mxu0 %v2236
        %v2300 = vpop.f32.mrf.mxu0
        %v2301 = vadd.f32 %v2215, %v2300
        %v2302 = vpop.f32.mrf.mxu0
        %v2303 = vadd.f32 %v2215, %v2302
        %2304 = vmatmul.bf16.gmra.mxu0 %v2239
        %v2305 = vpop.f32.mrf.mxu0
        %v2306 = vadd.f32 %v2215, %v2305
        %v2307 = vpop.f32.mrf.mxu0
        %v2308 = vadd.f32 %v2215, %v2307
        %2309 = vmatmul.bf16.gmra.mxu0 %v2242
        %v2310 = vpop.f32.mrf.mxu0
        %v2311 = vadd.f32 %v2215, %v2310
        %v2312 = vpop.f32.mrf.mxu0
        %v2313 = vadd.f32 %v2215, %v2312
        %2314 = vmatmul.bf16.gmra.mxu0 %v2245
        %v2315 = vpop.f32.mrf.mxu0
        %v2316 = vadd.f32 %v2215, %v2315
        %v2317 = vpop.f32.mrf.mxu0
        %v2318 = vadd.f32 %v2215, %v2317
        %2319 = vmatmul.bf16.gmra.mxu0 %v2248
        %v2320 = vpop.f32.mrf.mxu0
        %v2321 = vadd.f32 %v2215, %v2320
        %v2322 = vpop.f32.mrf.mxu0
        %v2323 = vadd.f32 %v2215, %v2322
        %2324 = vmatmul.bf16.gmra.mxu0 %v2251
        %v2325 = vpop.f32.mrf.mxu0
        %v2326 = vadd.f32 %v2215, %v2325
        %v2327 = vpop.f32.mrf.mxu0
        %v2328 = vadd.f32 %v2215, %v2327
        %2329 = vmatmul.bf16.gmra.mxu0 %v2254
        %v2330 = vpop.f32.mrf.mxu0
        %v2331 = vadd.f32 %v2215, %v2330
        %v2332 = vpop.f32.mrf.mxu0
        %v2333 = vadd.f32 %v2215, %v2332
        %2334 = vmatmul.bf16.gmra.mxu0 %v2257
        %v2335 = vpop.f32.mrf.mxu0
        %v2336 = vadd.f32 %v2215, %v2335
        %v2337 = vpop.f32.mrf.mxu0
        %v2338 = vadd.f32 %v2215, %v2337
        %2339 = vmatmul.bf16.gmra.mxu0 %v2260
        %v2340 = vpop.f32.mrf.mxu0
        %v2341 = vadd.f32 %v2215, %v2340
        %v2342 = vpop.f32.mrf.mxu0
        %v2343 = vadd.f32 %v2215, %v2342
        %2344 = vmatmul.bf16.gmra.mxu0 %v2263
        %v2345 = vpop.f32.mrf.mxu0
        %v2346 = vadd.f32 %v2215, %v2345
        %v2347 = vpop.f32.mrf.mxu0
        %v2348 = vadd.f32 %v2215, %v2347
        %2349 = vmatmul.bf16.gmra.mxu0 %v2266
        %v2350 = vpop.f32.mrf.mxu0
        %v2351 = vadd.f32 %v2215, %v2350
        %v2352 = vpop.f32.mrf.mxu0
        %v2353 = vadd.f32 %v2215, %v2352
        %2354 = vmatmul.bf16.gmra.mxu0 %v2269
        %v2355 = vpop.f32.mrf.mxu0
        %v2356 = vadd.f32 %v2215, %v2355
        %v2357 = vpop.f32.mrf.mxu0
        %v2358 = vadd.f32 %v2215, %v2357
        %2359 = vdwg.mxu0
        %v2360 = vmax.f32 %v2281, 0.0
        %v2361 = vmax.f32 %v2283, 0.0
        %v2362 = vmax.f32 %v2286, 0.0
        %v2363 = vmax.f32 %v2288, 0.0
        %v2364 = vmax.f32 %v2291, 0.0
        %v2365 = vmax.f32 %v2293, 0.0
        %v2366 = vmax.f32 %v2296, 0.0
        %v2367 = vmax.f32 %v2298, 0.0
        %v2368 = vmax.f32 %v2301, 0.0
        %v2369 = vmax.f32 %v2303, 0.0
        %v2370 = vmax.f32 %v2306, 0.0
        %v2371 = vmax.f32 %v2308, 0.0
        %v2372 = vmax.f32 %v2311, 0.0
        %v2373 = vmax.f32 %v2313, 0.0
        %v2374 = vmax.f32 %v2316, 0.0
        %v2375 = vmax.f32 %v2318, 0.0
        %v2376 = vmax.f32 %v2321, 0.0
        %v2377 = vmax.f32 %v2323, 0.0
        %v2378 = vmax.f32 %v2326, 0.0
        %v2379 = vmax.f32 %v2328, 0.0
        %v2380 = vmax.f32 %v2331, 0.0
        %v2381 = vmax.f32 %v2333, 0.0
        %v2382 = vmax.f32 %v2336, 0.0
        %v2383 = vmax.f32 %v2338, 0.0
        %v2384 = vmax.f32 %v2341, 0.0
        %v2385 = vmax.f32 %v2343, 0.0
        %v2386 = vmax.f32 %v2346, 0.0
        %v2387 = vmax.f32 %v2348, 0.0
        %v2388 = vmax.f32 %v2351, 0.0
        %v2389 = vmax.f32 %v2353, 0.0
        %v2390 = vmax.f32 %v2356, 0.0
        %v2391 = vmax.f32 %v2358, 0.0
        %v2392 = vpack.c.bf16 %v2283, %v2281
        %v2393 = vpack.c.bf16 %v2288, %v2286
        %v2394 = vpack.c.bf16 %v2293, %v2291
        %v2395 = vpack.c.bf16 %v2298, %v2296
        %v2396 = vpack.c.bf16 %v2303, %v2301
        %v2397 = vpack.c.bf16 %v2308, %v2306
        %v2398 = vpack.c.bf16 %v2313, %v2311
        %v2399 = vpack.c.bf16 %v2318, %v2316
        %v2400 = vpack.c.bf16 %v2323, %v2321
        %v2401 = vpack.c.bf16 %v2328, %v2326
        %v2402 = vpack.c.bf16 %v2333, %v2331
        %v2403 = vpack.c.bf16 %v2338, %v2336
        %v2404 = vpack.c.bf16 %v2343, %v2341
        %v2405 = vpack.c.bf16 %v2348, %v2346
        %v2406 = vpack.c.bf16 %v2353, %v2351
        %v2407 = vpack.c.bf16 %v2358, %v2356
        %v2412 = vunpack.c.l.b16 %v2058
        %v2413 = vunpack.c.l.b16 %v2059
        %v2414 = vunpack.c.l.b16 %v2060
        %v2415 = vunpack.c.l.b16 %v2061
        %v2416 = vpack.c.b16 %v2413, %v2412
        %v2417 = vpack.c.b16 %v2415, %v2414
        %v2421 = vsel %vm1975, %v2392, 0
        %v2424 = vsel %vm1975, %v2393, 0
        %v2427 = vsel %vm1975, %v2394, 0
        %v2430 = vsel %vm1975, %v2395, 0
        %v2433 = vsel %vm1975, %v2396, 0
        %v2436 = vsel %vm1975, %v2397, 0
        %v2439 = vsel %vm1975, %v2398, 0
        %v2442 = vsel %vm1975, %v2399, 0
        %v2445 = vsel %vm1975, %v2400, 0
        %v2448 = vsel %vm1975, %v2401, 0
        %v2451 = vsel %vm1975, %v2402, 0
        %v2454 = vsel %vm1975, %v2403, 0
        %v2457 = vsel %vm1975, %v2404, 0
        %v2460 = vsel %vm1975, %v2405, 0
        %v2463 = vsel %vm1975, %v2406, 0
        %v2466 = vsel %vm1975, %v2407, 0
        %2468 = vmatpush.bf16.msra.mxu0 0
        %2469 = vmatpush.bf16.msra.mxu0 0
        %2470 = vmatpush.bf16.msra.mxu0 0
        %2471 = vmatpush.bf16.msra.mxu0 0
        %2472 = vmatpush.bf16.msra.mxu0 0
        %2473 = vmatpush.bf16.msra.mxu0 0
        %2474 = vmatpush.bf16.msra.mxu0 %v2417
        %2475 = vmatpush.bf16.msra.mxu0 %v2416
        %2476 = vmatmul.bf16.gmra.mxu0 %v2421
        %v2477 = vpop.f32.mrf.mxu0
        %v2478 = vadd.f32 0.0, %v2477
        %v2479 = vpop.f32.mrf.mxu0
        %v2480 = vadd.f32 0.0, %v2479
        %2481 = vmatmul.bf16.gmra.mxu0 %v2424
        %v2482 = vpop.f32.mrf.mxu0
        %v2483 = vadd.f32 0.0, %v2482
        %v2484 = vpop.f32.mrf.mxu0
        %v2485 = vadd.f32 0.0, %v2484
        %2486 = vmatmul.bf16.gmra.mxu0 %v2427
        %v2487 = vpop.f32.mrf.mxu0
        %v2488 = vadd.f32 0.0, %v2487
        %v2489 = vpop.f32.mrf.mxu0
        %v2490 = vadd.f32 0.0, %v2489
        %2491 = vmatmul.bf16.gmra.mxu0 %v2430
        %v2492 = vpop.f32.mrf.mxu0
        %v2493 = vadd.f32 0.0, %v2492
        %v2494 = vpop.f32.mrf.mxu0
        %v2495 = vadd.f32 0.0, %v2494
        %2496 = vmatmul.bf16.gmra.mxu0 %v2433
        %v2497 = vpop.f32.mrf.mxu0
        %v2498 = vadd.f32 0.0, %v2497
        %v2499 = vpop.f32.mrf.mxu0
        %v2500 = vadd.f32 0.0, %v2499
        %2501 = vmatmul.bf16.gmra.mxu0 %v2436
        %v2502 = vpop.f32.mrf.mxu0
        %v2503 = vadd.f32 0.0, %v2502
        %v2504 = vpop.f32.mrf.mxu0
        %v2505 = vadd.f32 0.0, %v2504
        %2506 = vmatmul.bf16.gmra.mxu0 %v2439
        %v2507 = vpop.f32.mrf.mxu0
        %v2508 = vadd.f32 0.0, %v2507
        %v2509 = vpop.f32.mrf.mxu0
        %v2510 = vadd.f32 0.0, %v2509
        %2511 = vmatmul.bf16.gmra.mxu0 %v2442
        %v2512 = vpop.f32.mrf.mxu0
        %v2513 = vadd.f32 0.0, %v2512
        %v2514 = vpop.f32.mrf.mxu0
        %v2515 = vadd.f32 0.0, %v2514
        %2516 = vmatmul.bf16.gmra.mxu0 %v2445
        %v2517 = vpop.f32.mrf.mxu0
        %v2518 = vadd.f32 0.0, %v2517
        %v2519 = vpop.f32.mrf.mxu0
        %v2520 = vadd.f32 0.0, %v2519
        %2521 = vmatmul.bf16.gmra.mxu0 %v2448
        %v2522 = vpop.f32.mrf.mxu0
        %v2523 = vadd.f32 0.0, %v2522
        %v2524 = vpop.f32.mrf.mxu0
        %v2525 = vadd.f32 0.0, %v2524
        %2526 = vmatmul.bf16.gmra.mxu0 %v2451
        %v2527 = vpop.f32.mrf.mxu0
        %v2528 = vadd.f32 0.0, %v2527
        %v2529 = vpop.f32.mrf.mxu0
        %v2530 = vadd.f32 0.0, %v2529
        %2531 = vmatmul.bf16.gmra.mxu0 %v2454
        %v2532 = vpop.f32.mrf.mxu0
        %v2533 = vadd.f32 0.0, %v2532
        %v2534 = vpop.f32.mrf.mxu0
        %v2535 = vadd.f32 0.0, %v2534
        %2536 = vmatmul.bf16.gmra.mxu0 %v2457
        %v2537 = vpop.f32.mrf.mxu0
        %v2538 = vadd.f32 0.0, %v2537
        %v2539 = vpop.f32.mrf.mxu0
        %v2540 = vadd.f32 0.0, %v2539
        %2541 = vmatmul.bf16.gmra.mxu0 %v2460
        %v2542 = vpop.f32.mrf.mxu0
        %v2543 = vadd.f32 0.0, %v2542
        %v2544 = vpop.f32.mrf.mxu0
        %v2545 = vadd.f32 0.0, %v2544
        %2546 = vmatmul.bf16.gmra.mxu0 %v2463
        %v2547 = vpop.f32.mrf.mxu0
        %v2548 = vadd.f32 0.0, %v2547
        %v2549 = vpop.f32.mrf.mxu0
        %v2550 = vadd.f32 0.0, %v2549
        %2551 = vmatmul.bf16.gmra.mxu0 %v2466
        %v2552 = vpop.f32.mrf.mxu0
        %v2553 = vadd.f32 0.0, %v2552
        %v2554 = vpop.f32.mrf.mxu0
        %v2555 = vadd.f32 0.0, %v2554
        %2556 = vdwg.mxu0
        %v2557 = vsub.f32 %v2478, %v2135
        %v2558 = vsub.f32 %v2480, %v2137
        %v2559 = vsub.f32 %v2483, %v2140
        %v2560 = vsub.f32 %v2485, %v2142
        %v2561 = vsub.f32 %v2488, %v2145
        %v2562 = vsub.f32 %v2490, %v2147
        %v2563 = vsub.f32 %v2493, %v2150
        %v2564 = vsub.f32 %v2495, %v2152
        %v2565 = vsub.f32 %v2498, %v2155
        %v2566 = vsub.f32 %v2500, %v2157
        %v2567 = vsub.f32 %v2503, %v2160
        %v2568 = vsub.f32 %v2505, %v2162
        %v2569 = vsub.f32 %v2508, %v2165
        %v2570 = vsub.f32 %v2510, %v2167
        %v2571 = vsub.f32 %v2513, %v2170
        %v2572 = vsub.f32 %v2515, %v2172
        %v2573 = vsub.f32 %v2518, %v2175
        %v2574 = vsub.f32 %v2520, %v2177
        %v2575 = vsub.f32 %v2523, %v2180
        %v2576 = vsub.f32 %v2525, %v2182
        %v2577 = vsub.f32 %v2528, %v2185
        %v2578 = vsub.f32 %v2530, %v2187
        %v2579 = vsub.f32 %v2533, %v2190
        %v2580 = vsub.f32 %v2535, %v2192
        %v2581 = vsub.f32 %v2538, %v2195
        %v2582 = vsub.f32 %v2540, %v2197
        %v2583 = vsub.f32 %v2543, %v2200
        %v2584 = vsub.f32 %v2545, %v2202
        %v2585 = vsub.f32 %v2548, %v2205
        %v2586 = vsub.f32 %v2550, %v2207
        %v2587 = vsub.f32 %v2553, %v2210
        %v2588 = vsub.f32 %v2555, %v2212
        %v2589 = vmul.f32 %v2557, %v2557
        %v2590 = vmul.f32 %v2558, %v2558
        %v2591 = vmul.f32 %v2559, %v2559
        %v2592 = vmul.f32 %v2560, %v2560
        %v2593 = vmul.f32 %v2561, %v2561
        %v2594 = vmul.f32 %v2562, %v2562
        %v2595 = vmul.f32 %v2563, %v2563
        %v2596 = vmul.f32 %v2564, %v2564
        %v2597 = vmul.f32 %v2565, %v2565
        %v2598 = vmul.f32 %v2566, %v2566
        %v2599 = vmul.f32 %v2567, %v2567
        %v2600 = vmul.f32 %v2568, %v2568
        %v2601 = vmul.f32 %v2569, %v2569
        %v2602 = vmul.f32 %v2570, %v2570
        %v2603 = vmul.f32 %v2571, %v2571
        %v2604 = vmul.f32 %v2572, %v2572
        %v2605 = vmul.f32 %v2573, %v2573
        %v2606 = vmul.f32 %v2574, %v2574
        %v2607 = vmul.f32 %v2575, %v2575
        %v2608 = vmul.f32 %v2576, %v2576
        %v2609 = vmul.f32 %v2577, %v2577
        %v2610 = vmul.f32 %v2578, %v2578
        %v2611 = vmul.f32 %v2579, %v2579
        %v2612 = vmul.f32 %v2580, %v2580
        %v2613 = vmul.f32 %v2581, %v2581
        %v2614 = vmul.f32 %v2582, %v2582
        %v2615 = vmul.f32 %v2583, %v2583
        %v2616 = vmul.f32 %v2584, %v2584
        %v2617 = vmul.f32 %v2585, %v2585
        %v2618 = vmul.f32 %v2586, %v2586
        %v2619 = vmul.f32 %v2587, %v2587
        %v2620 = vmul.f32 %v2588, %v2588
        %vm2621 = vcmask 523264
        %v2622 = vsel %vm2621, %v2589, 0.0
        %v2623 = vsel %vm2621, %v2590, 0.0
        %v2624 = vadd.f32 %v2622, %v2623
        %v2625 = vsel %vm2621, %v2591, 0.0
        %v2626 = vadd.f32 %v2624, %v2625
        %v2627 = vsel %vm2621, %v2592, 0.0
        %v2628 = vadd.f32 %v2626, %v2627
        %v2629 = vsel %vm2621, %v2593, 0.0
        %v2630 = vadd.f32 %v2628, %v2629
        %v2631 = vsel %vm2621, %v2594, 0.0
        %v2632 = vadd.f32 %v2630, %v2631
        %v2633 = vsel %vm2621, %v2595, 0.0
        %v2634 = vadd.f32 %v2632, %v2633
        %v2635 = vsel %vm2621, %v2596, 0.0
        %v2636 = vadd.f32 %v2634, %v2635
        %v2637 = vsel %vm2621, %v2597, 0.0
        %v2638 = vadd.f32 %v2636, %v2637
        %v2639 = vsel %vm2621, %v2598, 0.0
        %v2640 = vadd.f32 %v2638, %v2639
        %v2641 = vsel %vm2621, %v2599, 0.0
        %v2642 = vadd.f32 %v2640, %v2641
        %v2643 = vsel %vm2621, %v2600, 0.0
        %v2644 = vadd.f32 %v2642, %v2643
        %v2645 = vsel %vm2621, %v2601, 0.0
        %v2646 = vadd.f32 %v2644, %v2645
        %v2647 = vsel %vm2621, %v2602, 0.0
        %v2648 = vadd.f32 %v2646, %v2647
        %v2649 = vsel %vm2621, %v2603, 0.0
        %v2650 = vadd.f32 %v2648, %v2649
        %v2651 = vsel %vm2621, %v2604, 0.0
        %v2652 = vadd.f32 %v2650, %v2651
        %v2653 = vsel %vm2621, %v2605, 0.0
        %v2654 = vadd.f32 %v2652, %v2653
        %v2655 = vsel %vm2621, %v2606, 0.0
        %v2656 = vadd.f32 %v2654, %v2655
        %v2657 = vsel %vm2621, %v2607, 0.0
        %v2658 = vadd.f32 %v2656, %v2657
        %v2659 = vsel %vm2621, %v2608, 0.0
        %v2660 = vadd.f32 %v2658, %v2659
        %v2661 = vsel %vm2621, %v2609, 0.0
        %v2662 = vadd.f32 %v2660, %v2661
        %v2663 = vsel %vm2621, %v2610, 0.0
        %v2664 = vadd.f32 %v2662, %v2663
        %v2665 = vsel %vm2621, %v2611, 0.0
        %v2666 = vadd.f32 %v2664, %v2665
        %v2667 = vsel %vm2621, %v2612, 0.0
        %v2668 = vadd.f32 %v2666, %v2667
        %v2669 = vsel %vm2621, %v2613, 0.0
        %v2670 = vadd.f32 %v2668, %v2669
        %v2671 = vsel %vm2621, %v2614, 0.0
        %v2672 = vadd.f32 %v2670, %v2671
        %v2673 = vsel %vm2621, %v2615, 0.0
        %v2674 = vadd.f32 %v2672, %v2673
        %v2675 = vsel %vm2621, %v2616, 0.0
        %v2676 = vadd.f32 %v2674, %v2675
        %v2677 = vsel %vm2621, %v2617, 0.0
        %v2678 = vadd.f32 %v2676, %v2677
        %v2679 = vsel %vm2621, %v2618, 0.0
        %v2680 = vadd.f32 %v2678, %v2679
        %v2681 = vsel %vm2621, %v2619, 0.0
        %v2682 = vadd.f32 %v2680, %v2681
        %v2683 = vsel %vm2621, %v2620, 0.0
        %v2684 = vadd.f32 %v2682, %v2683
        %2685 = vadd.xlane.f32.xlu0 %v2684
        %v2686 = vpop.xlane.xlu0 %2685
        %v2687 = vrot.slane %v2686, 4
        %v2688 = vadd.f32 %v2686, %v2687
        %v2689 = vrot.slane %v2688, 2
        %v2690 = vadd.f32 %v2688, %v2689
        %v2691 = vrot.slane %v2690, 1
        %v2692 = vadd.f32 %v2690, %v2691
        %s2693 = vtos %v2692
        %s2694 = sadd.f32 %s2049, %s2693
        %v2695 = vsel %vm1975, %v2360, 0.0
        %v2696 = vsel %vm1975, %v2361, 0.0
        %v2697 = vadd.f32 %v2695, %v2696
        %v2698 = vsel %vm1975, %v2362, 0.0
        %v2699 = vadd.f32 %v2697, %v2698
        %v2700 = vsel %vm1975, %v2363, 0.0
        %v2701 = vadd.f32 %v2699, %v2700
        %v2702 = vsel %vm1975, %v2364, 0.0
        %v2703 = vadd.f32 %v2701, %v2702
        %v2704 = vsel %vm1975, %v2365, 0.0
        %v2705 = vadd.f32 %v2703, %v2704
        %v2706 = vsel %vm1975, %v2366, 0.0
        %v2707 = vadd.f32 %v2705, %v2706
        %v2708 = vsel %vm1975, %v2367, 0.0
        %v2709 = vadd.f32 %v2707, %v2708
        %v2710 = vsel %vm1975, %v2368, 0.0
        %v2711 = vadd.f32 %v2709, %v2710
        %v2712 = vsel %vm1975, %v2369, 0.0
        %v2713 = vadd.f32 %v2711, %v2712
        %v2714 = vsel %vm1975, %v2370, 0.0
        %v2715 = vadd.f32 %v2713, %v2714
        %v2716 = vsel %vm1975, %v2371, 0.0
        %v2717 = vadd.f32 %v2715, %v2716
        %v2718 = vsel %vm1975, %v2372, 0.0
        %v2719 = vadd.f32 %v2717, %v2718
        %v2720 = vsel %vm1975, %v2373, 0.0
        %v2721 = vadd.f32 %v2719, %v2720
        %v2722 = vsel %vm1975, %v2374, 0.0
        %v2723 = vadd.f32 %v2721, %v2722
        %v2724 = vsel %vm1975, %v2375, 0.0
        %v2725 = vadd.f32 %v2723, %v2724
        %v2726 = vsel %vm1975, %v2376, 0.0
        %v2727 = vadd.f32 %v2725, %v2726
        %v2728 = vsel %vm1975, %v2377, 0.0
        %v2729 = vadd.f32 %v2727, %v2728
        %v2730 = vsel %vm1975, %v2378, 0.0
        %v2731 = vadd.f32 %v2729, %v2730
        %v2732 = vsel %vm1975, %v2379, 0.0
        %v2733 = vadd.f32 %v2731, %v2732
        %v2734 = vsel %vm1975, %v2380, 0.0
        %v2735 = vadd.f32 %v2733, %v2734
        %v2736 = vsel %vm1975, %v2381, 0.0
        %v2737 = vadd.f32 %v2735, %v2736
        %v2738 = vsel %vm1975, %v2382, 0.0
        %v2739 = vadd.f32 %v2737, %v2738
        %v2740 = vsel %vm1975, %v2383, 0.0
        %v2741 = vadd.f32 %v2739, %v2740
        %v2742 = vsel %vm1975, %v2384, 0.0
        %v2743 = vadd.f32 %v2741, %v2742
        %v2744 = vsel %vm1975, %v2385, 0.0
        %v2745 = vadd.f32 %v2743, %v2744
        %v2746 = vsel %vm1975, %v2386, 0.0
        %v2747 = vadd.f32 %v2745, %v2746
        %v2748 = vsel %vm1975, %v2387, 0.0
        %v2749 = vadd.f32 %v2747, %v2748
        %v2750 = vsel %vm1975, %v2388, 0.0
        %v2751 = vadd.f32 %v2749, %v2750
        %v2752 = vsel %vm1975, %v2389, 0.0
        %v2753 = vadd.f32 %v2751, %v2752
        %v2754 = vsel %vm1975, %v2390, 0.0
        %v2755 = vadd.f32 %v2753, %v2754
        %v2756 = vsel %vm1975, %v2391, 0.0
        %v2757 = vadd.f32 %v2755, %v2756
        %v2758 = vrot.slane %v2757, 4
        %v2759 = vadd.f32 %v2757, %v2758
        %v2760 = vrot.slane %v2759, 2
        %v2761 = vadd.f32 %v2759, %v2760
        %v2762 = vrot.slane %v2761, 1
        %v2763 = vadd.f32 %v2761, %v2762
        %v2764 = vpack.c.bf16 %v2763, %v2763
        %v2765 = vld [vmem:[%s16] sm:$0xf]
        %v2766 = vld [vmem:[%s16 + $0x4] sm:$0xf]
        %v2767 = vld [vmem:[%s16 + $0x8] sm:$0xf]
        %v2768 = vld [vmem:[%s16 + $0xc] sm:$0xf]
        %v2769 = vld [vmem:[%s17] sm:$0x1]
        %v2774 = vunpack.c.l.b16 %v2765
        %v2775 = vunpack.c.l.b16 %v2766
        %v2776 = vunpack.c.l.b16 %v2767
        %v2777 = vunpack.c.l.b16 %v2768
        %v2778 = vpack.c.b16 %v2775, %v2774
        %v2779 = vpack.c.b16 %v2777, %v2776
        %v2783 = vsel %vm1975, %v2764, 0
        %2785 = vmatpush.bf16.msra.mxu0 0
        %2786 = vmatpush.bf16.msra.mxu0 0
        %2787 = vmatpush.bf16.msra.mxu0 0
        %2788 = vmatpush.bf16.msra.mxu0 0
        %2789 = vmatpush.bf16.msra.mxu0 0
        %2790 = vmatpush.bf16.msra.mxu0 0
        %2791 = vmatpush.bf16.msra.mxu0 %v2779
        %2792 = vmatpush.bf16.msra.mxu0 %v2778
        %2793 = vmatmul.bf16.gmra.mxu0 %v2783
        %v2794 = vpop.f32.mrf.mxu0
        %v2795 = vadd.f32 %v2769, %v2794
        %v2796 = vpop.f32.mrf.mxu0
        %2797 = vdwg.mxu0
        %vm2798 = vcmask 73728
        %2799 = vst.msk [vmem:[%s595] sm:$0x1] %vm2798, %v2795
        %v2800 = vstv %s2694
        %vm2801 = vcmask 0
        %2802 = vst.msk [vmem:[%s608] sm:$0x1] %vm2801, %v2800
        %s2803 = sand.u32 %s425, 1
        %s2804 = scalar_lea.sflag [#allocation3], %s2803
        %s2805 = sand.u32 %s425, 1
        %s2806 = scalar_lea.vmem [#allocation2], %s2805
        %p2807 = scmp.lt.s32.totalorder %s34, 1
        %s2808 = scalar_select %p2807, %s34, 1
        %s2809 = scalar_lea.vmem %s19, %s2808
        // Predicated region
        $region93: #{distiller_forward.1} parent=91 // pred_check
          %p2810 = pneg %p435
        $region94: #{distiller_forward.1} parent=91 // pred_check_branch
          %2812 = sbr.rel (%p2810) target = $region96
        $region95: #{distiller_forward.1} parent=91 // pred_region
          %2814 = vsyncadd %s2804, 0
          %s2815 = scalar_lea.hbm %s18, %s34
          %s2817 = sshll.u32 %s2806, 4
          %s2818 = int_to_ptr.vmem [resolvable:$true] %s2817
          %s2819 = sshll.u32 %s2815, 4
          %s2820 = int_to_ptr.hbm [resolvable:$true] %s2819
          %2822 = dma.vmem_to_hbm [thread:$0]  %s2818, 16, %s2820, %s2804
        $region96: #{distiller_forward.1} parent=91 // pred_fallthru
          _
        // Predicated region
        $region97: #{distiller_forward.1} parent=91 // pred_check
          %p2823 = pneg %p461
        $region98: #{distiller_forward.1} parent=91 // pred_check_branch
          %2825 = sbr.rel (%p2823) target = $region100
        $region99: #{distiller_forward.1} parent=91 // pred_region
          _
        $region100: #{distiller_forward.1} parent=91 // pred_fallthru
          _
      $region92: #{distiller_forward.1} parent=5 // pred_fallthru
        _
      %p2826 = scmp.le.s32.totalorder 2, %s29
      // Predicated region
      $region101: #{distiller_forward.1} parent=5 // pred_check
        %p2827 = pneg %p2826
      $region102: #{distiller_forward.1} parent=5 // pred_check_branch
        %2829 = sbr.rel (%p2827) target = $region104
      $region103: #{distiller_forward.1} parent=5 // pred_region
        %s2830 = ssub.s32 %s29, 2
        // Predicated region
        $region105: #{distiller_forward.1} parent=103 // pred_check
          %p2831 = pneg %p441
        $region106: #{distiller_forward.1} parent=103 // pred_check_branch
          %2833 = sbr.rel (%p2831) target = $region108
        $region107: #{distiller_forward.1} parent=103 // pred_region
          %s2834 = sand.u32 %s426, 1
          %s2835 = scalar_lea.sflag [#allocation3], %s2834
          %s2836 = sand.u32 %s426, 1
          %s2837 = scalar_lea.vmem [#allocation2], %s2836
          %2839 = dma.done %s2835, 16
        $region108: #{distiller_forward.1} parent=103 // pred_fallthru
          _
        // Predicated region
        $region109: #{distiller_forward.1} parent=103 // pred_check
          %p2840 = pneg %p467
        $region110: #{distiller_forward.1} parent=103 // pred_check_branch
          %2842 = sbr.rel (%p2840) target = $region112
        $region111: #{distiller_forward.1} parent=103 // pred_region
          %p2843 = scmp.lt.s32.totalorder %s35, 1
          %s2844 = scalar_select %p2843, %s35, 1
          %s2845 = scalar_lea.vmem %s19, %s2844
        $region112: #{distiller_forward.1} parent=103 // pred_fallthru
          _
      $region104: #{distiller_forward.1} parent=5 // pred_fallthru
        _
    $region6: #{distiller_forward.1} parent=1 // loop_footer
      %s33 = sadd.s32 1, %s29
    $region7: #{distiller_forward.1} parent=1 // loop_footer_branch
      %28 = sbr.rel target = $region3
    $region8: #{distiller_forward.1} parent=1 // loop_exit
      _
    %2846 = vsyncpa [#allocation3], 1
    %s2847 = scalar_lea.sflag [#allocation3], 1
    %2848 = vsyncpa %s2847, 1

</llo_original>
